<compile_context>
chip_gen: v5e
topology: v5e:2x2
jax: 0.10.0
libtpu: 0.0.40
codegen_flags: <defaults>
</compile_context>

<pallas_src>
import functools

import jax
import jax.numpy as jnp
from jax.experimental import pallas as pl
from jax.experimental.pallas import tpu as pltpu

# ---------------- Small synthetic ModelArgs ----------------
VOCAB = 64
DIM = 32
N_LAYERS = 2
N_HEADS = 4
N_KV_HEADS = 2
HEAD_DIM = DIM // N_HEADS            # 8
N_REP = N_HEADS // N_KV_HEADS        # 2
FFN_HIDDEN = 64                      # SwiGLU hidden size
NORM_EPS = 1e-5
ROPE_THETA = 500000.0
BATCH = 2
SEQ = 8

Q_WIDTH = N_HEADS * HEAD_DIM         # 32
KV_WIDTH = N_KV_HEADS * HEAD_DIM     # 16
QK_WIDTH = Q_WIDTH + KV_WIDTH        # 48 (RoPE is applied to q|k jointly)
QKV_WIDTH = Q_WIDTH + 2 * KV_WIDTH   # 64
N_SLOTS = N_HEADS + N_KV_HEADS       # 6 rotated slots (q heads + k heads)
HALF = HEAD_DIM // 2                 # 4  (per-head complex pairs)
QK_HALF = QK_WIDTH // 2              # 24 (width of the "reals" / "imags" slabs)
K_REAL_OFF = Q_WIDTH // 2            # 16 (offset of k-head reals inside a slab)


# ---------------- Embedding: scalar-prefetch gather, 8 rows per grid step ----------------
def _gather_kernel(ids_ref, table_ref, o_ref, *, rows):
    base = pl.program_id(0) * rows
    for j in range(rows):                                     # unrolled
        tok = ids_ref[base + j]
        o_ref[pl.ds(j, 1), :] = table_ref[pl.ds(tok, 1), :]


def embedding_lookup(ids_flat, table, rows_per_step=8):
    n = ids_flat.shape[0]
    vocab, d = table.shape
    rows = rows_per_step
    while n % rows:                   # keep the toy grid exact
        rows //= 2
    # TODO(synk): at real vocab sizes keep the table in HBM (pl.ANY) and gather
    # rows with a manual make_async_copy double-buffer instead of a VMEM table.
    return pl.pallas_call(
        functools.partial(_gather_kernel, rows=rows),
        out_shape=jax.ShapeDtypeStruct((n, d), table.dtype),
        grid_spec=pltpu.PrefetchScalarGridSpec(
            num_scalar_prefetch=1,
            grid=(n // rows,),
            in_specs=[pl.BlockSpec((vocab, d), lambda i, ids: (0, 0))],
            out_specs=pl.BlockSpec((rows, d), lambda i, ids: (i, 0)),
        ),
        compiler_params=pltpu.CompilerParams(
            dimension_semantics=("parallel",)),
    )(ids_flat.astype(jnp.int32), table)


# ---------------- Fused all-layers transformer kernel ----------------
def _stack_kernel(x_ref, wqkv_ref, wo_ref, w13_ref, w2_ref,
                  attn_nw_ref, ffn_nw_ref, cos_ref, sin_ref, o_ref, *, eps):
    layer = pl.program_id(1)

    # Layer 0: seed the resident residual stream.  The output block index is
    # constant across the layer axis, so it stays in VMEM for all layers of this
    # batch element and is written back to HBM only once.
    @pl.when(layer == 0)
    def _():
        o_ref[...] = x_ref[...]

    h = o_ref[...]                                            # (T, DIM) f32

    # ---- RMSNorm (attention) ----
    ms = jnp.mean(h * h, axis=-1, keepdims=True)
    xn = h * jax.lax.rsqrt(ms + eps) * attn_nw_ref[...]

    # ---- fused QKV projection: bf16 MXU inputs, f32 accumulation.
    #      q columns are pre-scaled by 1/sqrt(head_dim) at packing time and the
    #      q|k columns are packed as [all reals | all imags]. ----
    qkv = jnp.dot(xn.astype(jnp.bfloat16), wqkv_ref[...],
                  preferred_element_type=jnp.float32)         # (T, QKV_WIDTH)

    # ---- RoPE on the split layout: pure VPU math, no rotation matrix ----
    cos = cos_ref[...]                                        # (T, QK_HALF)
    sin = sin_ref[...]
    re = qkv[:, :QK_HALF]
    im = qkv[:, QK_HALF:QK_WIDTH]
    ra = re * cos - im * sin                                  # rotated reals
    rb = im * cos + re * sin                                  # rotated imags
    v = qkv[:, QK_WIDTH:QKV_WIDTH]                            # (T, KV_WIDTH) natural layout

    # ---- GQA causal attention: independent heads, single wo matmul after ----
    t = h.shape[0]
    qi = jax.lax.broadcasted_iota(jnp.int32, (t, t), 0)
    ki = jax.lax.broadcasted_iota(jnp.int32, (t, t), 1)
    neg = jnp.where(ki <= qi, 0.0, -1e30).astype(jnp.float32)  # shared additive mask

    o_heads = []
    for head in range(N_HEADS):
        g = head // N_REP                                      # kv group (no repeat)
        qh = jnp.concatenate([ra[:, head * HALF:(head + 1) * HALF],
                              rb[:, head * HALF:(head + 1) * HALF]], axis=1)
        ko = K_REAL_OFF + g * HALF
        kh = jnp.concatenate([ra[:, ko:ko + HALF],
                              rb[:, ko:ko + HALF]], axis=1)
        vh = v[:, g * HEAD_DIM:(g + 1) * HEAD_DIM]
        s = jax.lax.dot_general(qh, kh, (((1,), (1,)), ((), ())),
                                preferred_element_type=jnp.float32) + neg
        m = jnp.max(s, axis=-1, keepdims=True)
        p = jnp.exp(s - m)
        p = p * pl.reciprocal(jnp.sum(p, axis=-1, keepdims=True), approx=True)
        o_heads.append(jnp.dot(p, vh, preferred_element_type=jnp.float32))

    o_all = jnp.concatenate(o_heads, axis=1).astype(jnp.bfloat16)   # (T, Q_WIDTH), one cast
    h = h + jnp.dot(o_all, wo_ref[...], preferred_element_type=jnp.float32)

    # ---- RMSNorm (FFN) + fused [w1|w3] SwiGLU (lane-dense 128-wide) + w2 ----
    ms2 = jnp.mean(h * h, axis=-1, keepdims=True)
    hn = h * jax.lax.rsqrt(ms2 + eps) * ffn_nw_ref[...]
    u = jnp.dot(hn.astype(jnp.bfloat16), w13_ref[...],
                preferred_element_type=jnp.float32)           # (T, 2*FFN_HIDDEN)
    gate = u[:, :FFN_HIDDEN]
    up = u[:, FFN_HIDDEN:]
    act = (gate * jax.nn.sigmoid(gate)) * up                  # f32 elementwise (v5e-safe)
    h = h + jnp.dot(act.astype(jnp.bfloat16), w2_ref[...],
                    preferred_element_type=jnp.float32)

    o_ref[...] = h


def transformer_stack(h0, stack, cosw, sinw):
    b, t, d = h0.shape
    n_layers = stack['wqkv'].shape[0]

    def wspec(arr):   # stacked per-layer weight: stream block `layer` each step
        trailing = arr.shape[1:]
        return pl.BlockSpec((pl.Squeezed(),) + trailing, lambda bi, li: (li, 0, 0))

    def cspec(arr):   # grid-constant 2-D table
        return pl.BlockSpec(arr.shape, lambda bi, li: (0, 0))

    act_spec = pl.BlockSpec((pl.Squeezed(), t, d), lambda bi, li: (bi, 0, 0))

    # TODO(synk): at real model sizes stream K/N weight tiles with extra
    # "arbitrary" grid axes + f32 VMEM accumulators (tiles sized against 64 MiB
    # VMEM on v7x, 256-multiples on v6e/v7x MXU) and mark grid-constant blocks
    # (cos/sin) pipeline_mode=pl.Buffered(1) to avoid double-buffering them.
    return pl.pallas_call(
        functools.partial(_stack_kernel, eps=NORM_EPS),
        out_shape=jax.ShapeDtypeStruct((b, t, d), jnp.float32),
        grid_spec=pltpu.PrefetchScalarGridSpec(
            num_scalar_prefetch=0,
            grid=(b, n_layers),
            in_specs=[
                act_spec,
                wspec(stack['wqkv']),
                wspec(stack['wo']),
                wspec(stack['w13']),
                wspec(stack['w2']),
                wspec(stack['attn_norm']),
                wspec(stack['ffn_norm']),
                cspec(cosw),
                cspec(sinw),
            ],
            out_specs=pl.BlockSpec((pl.Squeezed(), t, d), lambda bi, li: (bi, 0, 0)),
        ),
        compiler_params=pltpu.CompilerParams(
            dimension_semantics=("parallel", "arbitrary")),   # batch over v7x TCs, layers sequential
    )(h0, stack['wqkv'], stack['wo'], stack['w13'], stack['w2'],
      stack['attn_norm'], stack['ffn_norm'], cosw, sinw)


# ---------------- Final RMSNorm + vocab projection (row-parallel grid) ----------------
def _final_kernel(x_ref, nw_ref, w_ref, o_ref, *, eps):
    x = x_ref[...]
    ms = jnp.mean(x * x, axis=-1, keepdims=True)
    xn = x * jax.lax.rsqrt(ms + eps) * nw_ref[...]
    o_ref[...] = jnp.dot(xn.astype(jnp.bfloat16), w_ref[...],
                         preferred_element_type=jnp.float32)


def final_norm_project(x2d, norm_w, out_w_t, row_tile=8):
    n, d = x2d.shape
    v = out_w_t.shape[1]
    # TODO(synk): at real vocab sizes add a vocab grid axis with ~256 (v7x) /
    # ~512 (v5e-v6e) lane-dense tiles instead of a whole-vocab block.
    return pl.pallas_call(
        functools.partial(_final_kernel, eps=NORM_EPS),
        out_shape=jax.ShapeDtypeStruct((n, v), jnp.float32),
        grid_spec=pltpu.PrefetchScalarGridSpec(
            num_scalar_prefetch=0,
            grid=(pl.cdiv(n, row_tile),),
            in_specs=[pl.BlockSpec((row_tile, d), lambda i: (i, 0)),
                      pl.BlockSpec((1, d), lambda i: (0, 0)),
                      pl.BlockSpec((d, v), lambda i: (0, 0))],
            out_specs=pl.BlockSpec((row_tile, v), lambda i: (i, 0)),
        ),
        compiler_params=pltpu.CompilerParams(
            dimension_semantics=("parallel",)),
    )(x2d, norm_w, out_w_t)


# ---------------- RoPE tables (split real/imag layout; constant-folded by jit) ----------
def precompute_rope_tables(seq_len):
    inv = 1.0 / (ROPE_THETA ** (jnp.arange(0, HEAD_DIM, 2, dtype=jnp.float32) / HEAD_DIM))
    pos = jnp.arange(seq_len, dtype=jnp.float32)
    freqs = jnp.outer(pos, inv)                               # (T, HEAD_DIM/2)
    cosw = jnp.tile(jnp.cos(freqs), (1, N_SLOTS))             # (T, QK_HALF)
    sinw = jnp.tile(jnp.sin(freqs), (1, N_SLOTS))
    return cosw, sinw


def _real_imag_perm():
    # new column -> original column of the packed (DIM, QK_WIDTH) q|k projection.
    # New layout: [real part of pair p of slot s for all (s, p) | imag parts].
    # It is a per-head permutation, so per-head q.k scores are unchanged.
    perm = []
    for part in range(2):                                     # 0: reals, 1: imags
        for s in range(N_SLOTS):
            for p in range(HALF):
                perm.append(s * HEAD_DIM + 2 * p + part)
    return jnp.asarray(perm, dtype=jnp.int32)


# ---------------- Params (PyTorch layout -> stacked / permuted / bf16) ----------
def init_params(key):
    ks = jax.random.split(key, 2 + N_LAYERS)

    def w(k, shape):
        return jax.random.normal(k, shape, jnp.float32) * 0.02

    perm = _real_imag_perm()
    q_scale = 1.0 / (HEAD_DIM ** 0.5)

    wqkv_l, wo_l, w13_l, w2_l, an_l, fn_l = [], [], [], [], [], []
    for layer in range(N_LAYERS):
        lk = jax.random.split(ks[2 + layer], 7)
        wq = w(lk[0], (Q_WIDTH, DIM))
        wk = w(lk[1], (KV_WIDTH, DIM))
        wv = w(lk[2], (KV_WIDTH, DIM))
        wo = w(lk[3], (DIM, Q_WIDTH))
        w1 = w(lk[4], (FFN_HIDDEN, DIM))
        w3 = w(lk[5], (FFN_HIDDEN, DIM))
        w2 = w(lk[6], (DIM, FFN_HIDDEN))
        # fold 1/sqrt(head_dim) into wq; permute q|k output columns to [reals|imags]
        qk_t = jnp.concatenate([wq.T * q_scale, wk.T], axis=1)[:, perm]
        wqkv_l.append(jnp.concatenate([qk_t, wv.T], axis=1).astype(jnp.bfloat16))  # (DIM, 64)
        wo_l.append(wo.T.astype(jnp.bfloat16))                                      # (32, 32)
        w13_l.append(jnp.concatenate([w1.T, w3.T], axis=1).astype(jnp.bfloat16))    # (32, 128)
        w2_l.append(w2.T.astype(jnp.bfloat16))                                      # (64, 32)
        an_l.append(jnp.ones((1, DIM), jnp.float32))
        fn_l.append(jnp.ones((1, DIM), jnp.float32))

    return {
        'tok_emb': w(ks[0], (VOCAB, DIM)),                                   # f32 table
        'out_w_t': w(ks[1], (VOCAB, DIM)).T.astype(jnp.bfloat16),            # (DIM, VOCAB)
        'final_norm': jnp.ones((1, DIM), jnp.float32),
        'stack': {
            'wqkv': jnp.stack(wqkv_l),       # (L, DIM, QKV_WIDTH)
            'wo': jnp.stack(wo_l),           # (L, Q_WIDTH, DIM)
            'w13': jnp.stack(w13_l),         # (L, DIM, 2*FFN_HIDDEN)
            'w2': jnp.stack(w2_l),           # (L, FFN_HIDDEN, DIM)
            'attn_norm': jnp.stack(an_l),    # (L, 1, DIM)
            'ffn_norm': jnp.stack(fn_l),     # (L, 1, DIM)
        },
    }


# ---------------- Forward (inference=True path: returns (logits, None)) ----------
@functools.partial(jax.jit, static_argnames=('start_pos',))
def transformer_forward(params, tokens, start_pos=0):
    # TODO(synk): KV-cache decode (start_pos > 0) and the training
    # F.cross_entropy path (inference=False) are not implemented here.
    assert start_pos == 0
    b, t = tokens.shape
    cosw, sinw = precompute_rope_tables(t)

    h = embedding_lookup(tokens.reshape(-1), params['tok_emb']).reshape(b, t, DIM)
    h = transformer_stack(h, params['stack'], cosw, sinw)
    logits = final_norm_project(h.reshape(b * t, DIM),
                                params['final_norm'], params['out_w_t'])
    logits = logits.reshape(b, t, VOCAB).astype(jnp.float32)
    return logits, None


if __name__ == "__main__":
    key = jax.random.PRNGKey(0)
    pkey, tkey = jax.random.split(key)
    params = init_params(pkey)
    tokens = jax.random.randint(tkey, (BATCH, SEQ), 0, VOCAB, dtype=jnp.int32)
    logits, loss = transformer_forward(params, tokens, start_pos=0)
    logits = jax.block_until_ready(logits)
    assert logits.shape == (BATCH, SEQ, VOCAB)
    assert logits.dtype == jnp.float32
    assert loss is None
    assert bool(jnp.all(jnp.isfinite(logits)))
    print("KERNEL_OK")
</pallas_src>

<mosaic_0001>
module attributes {stable_mosaic.version = 11 : i64} {
  func.func @_gather_kernel(%arg0: i32, %arg1: memref<16xi32, #tpu.memory_space<smem>>, %arg2: memref<64x32xf32, #tpu.memory_space<vmem>>, %arg3: memref<8x32xf32, #tpu.memory_space<vmem>>) attributes {dimension_semantics = [#tpu.dimension_semantics<parallel>], iteration_bounds = array<i64: 2>, scalar_prefetch = 1 : i64, scratch_operands = 0 : i64, tpu.core_type = #tpu.core_type<tc>, window_params = [{pipeline_mode = #tpu.pipeline_mode<synchronous>, transform_indices = @transform_0, window_bounds = array<i64: 64, 32>}, {transform_indices = @transform_1, window_bounds = array<i64: 8, 32>}]} {
    %c8_i32 = arith.constant 8 : i32
    %0 = arith.muli %arg0, %c8_i32 : i32
    %c0_i32 = arith.constant 0 : i32
    %1 = arith.addi %0, %c0_i32 : i32
    %2 = arith.index_cast %1 : i32 to index
    %3 = memref.load %arg1[%2] : memref<16xi32, #tpu.memory_space<smem>>
    %4 = arith.index_cast %3 : i32 to index
    %c0 = arith.constant 0 : index
    %5 = vector.load %arg2[%4, %c0] : memref<64x32xf32, #tpu.memory_space<vmem>>, vector<1x32xf32>
    %c0_0 = arith.constant 0 : index
    %c0_1 = arith.constant 0 : index
    %6 = vector.load %arg3[%c0_0, %c0_1] : memref<8x32xf32, #tpu.memory_space<vmem>>, vector<1x32xf32>
    tpu.vector_store %arg3[%c0_0, %c0_1], %5 {strides = array<i32>} : memref<8x32xf32, #tpu.memory_space<vmem>>, vector<1x32xf32>,
    %c1_i32 = arith.constant 1 : i32
    %7 = arith.addi %0, %c1_i32 : i32
    %8 = arith.index_cast %7 : i32 to index
    %9 = memref.load %arg1[%8] : memref<16xi32, #tpu.memory_space<smem>>
    %10 = arith.index_cast %9 : i32 to index
    %c0_2 = arith.constant 0 : index
    %11 = vector.load %arg2[%10, %c0_2] : memref<64x32xf32, #tpu.memory_space<vmem>>, vector<1x32xf32>
    %c1 = arith.constant 1 : index
    %c0_3 = arith.constant 0 : index
    %12 = vector.load %arg3[%c1, %c0_3] : memref<8x32xf32, #tpu.memory_space<vmem>>, vector<1x32xf32>
    tpu.vector_store %arg3[%c1, %c0_3], %11 {strides = array<i32>} : memref<8x32xf32, #tpu.memory_space<vmem>>, vector<1x32xf32>,
    %c2_i32 = arith.constant 2 : i32
    %13 = arith.addi %0, %c2_i32 : i32
    %14 = arith.index_cast %13 : i32 to index
    %15 = memref.load %arg1[%14] : memref<16xi32, #tpu.memory_space<smem>>
    %16 = arith.index_cast %15 : i32 to index
    %c0_4 = arith.constant 0 : index
    %17 = vector.load %arg2[%16, %c0_4] : memref<64x32xf32, #tpu.memory_space<vmem>>, vector<1x32xf32>
    %c2 = arith.constant 2 : index
    %c0_5 = arith.constant 0 : index
    %18 = vector.load %arg3[%c2, %c0_5] : memref<8x32xf32, #tpu.memory_space<vmem>>, vector<1x32xf32>
    tpu.vector_store %arg3[%c2, %c0_5], %17 {strides = array<i32>} : memref<8x32xf32, #tpu.memory_space<vmem>>, vector<1x32xf32>,
    %c3_i32 = arith.constant 3 : i32
    %19 = arith.addi %0, %c3_i32 : i32
    %20 = arith.index_cast %19 : i32 to index
    %21 = memref.load %arg1[%20] : memref<16xi32, #tpu.memory_space<smem>>
    %22 = arith.index_cast %21 : i32 to index
    %c0_6 = arith.constant 0 : index
    %23 = vector.load %arg2[%22, %c0_6] : memref<64x32xf32, #tpu.memory_space<vmem>>, vector<1x32xf32>
    %c3 = arith.constant 3 : index
    %c0_7 = arith.constant 0 : index
    %24 = vector.load %arg3[%c3, %c0_7] : memref<8x32xf32, #tpu.memory_space<vmem>>, vector<1x32xf32>
    tpu.vector_store %arg3[%c3, %c0_7], %23 {strides = array<i32>} : memref<8x32xf32, #tpu.memory_space<vmem>>, vector<1x32xf32>,
    %c4_i32 = arith.constant 4 : i32
    %25 = arith.addi %0, %c4_i32 : i32
    %26 = arith.index_cast %25 : i32 to index
    %27 = memref.load %arg1[%26] : memref<16xi32, #tpu.memory_space<smem>>
    %28 = arith.index_cast %27 : i32 to index
    %c0_8 = arith.constant 0 : index
    %29 = vector.load %arg2[%28, %c0_8] : memref<64x32xf32, #tpu.memory_space<vmem>>, vector<1x32xf32>
    %c4 = arith.constant 4 : index
    %c0_9 = arith.constant 0 : index
    %30 = vector.load %arg3[%c4, %c0_9] : memref<8x32xf32, #tpu.memory_space<vmem>>, vector<1x32xf32>
    tpu.vector_store %arg3[%c4, %c0_9], %29 {strides = array<i32>} : memref<8x32xf32, #tpu.memory_space<vmem>>, vector<1x32xf32>,
    %c5_i32 = arith.constant 5 : i32
    %31 = arith.addi %0, %c5_i32 : i32
    %32 = arith.index_cast %31 : i32 to index
    %33 = memref.load %arg1[%32] : memref<16xi32, #tpu.memory_space<smem>>
    %34 = arith.index_cast %33 : i32 to index
    %c0_10 = arith.constant 0 : index
    %35 = vector.load %arg2[%34, %c0_10] : memref<64x32xf32, #tpu.memory_space<vmem>>, vector<1x32xf32>
    %c5 = arith.constant 5 : index
    %c0_11 = arith.constant 0 : index
    %36 = vector.load %arg3[%c5, %c0_11] : memref<8x32xf32, #tpu.memory_space<vmem>>, vector<1x32xf32>
    tpu.vector_store %arg3[%c5, %c0_11], %35 {strides = array<i32>} : memref<8x32xf32, #tpu.memory_space<vmem>>, vector<1x32xf32>,
    %c6_i32 = arith.constant 6 : i32
    %37 = arith.addi %0, %c6_i32 : i32
    %38 = arith.index_cast %37 : i32 to index
    %39 = memref.load %arg1[%38] : memref<16xi32, #tpu.memory_space<smem>>
    %40 = arith.index_cast %39 : i32 to index
    %c0_12 = arith.constant 0 : index
    %41 = vector.load %arg2[%40, %c0_12] : memref<64x32xf32, #tpu.memory_space<vmem>>, vector<1x32xf32>
    %c6 = arith.constant 6 : index
    %c0_13 = arith.constant 0 : index
    %42 = vector.load %arg3[%c6, %c0_13] : memref<8x32xf32, #tpu.memory_space<vmem>>, vector<1x32xf32>
    tpu.vector_store %arg3[%c6, %c0_13], %41 {strides = array<i32>} : memref<8x32xf32, #tpu.memory_space<vmem>>, vector<1x32xf32>,
    %c7_i32 = arith.constant 7 : i32
    %43 = arith.addi %0, %c7_i32 : i32
    %44 = arith.index_cast %43 : i32 to index
    %45 = memref.load %arg1[%44] : memref<16xi32, #tpu.memory_space<smem>>
    %46 = arith.index_cast %45 : i32 to index
    %c0_14 = arith.constant 0 : index
    %47 = vector.load %arg2[%46, %c0_14] : memref<64x32xf32, #tpu.memory_space<vmem>>, vector<1x32xf32>
    %c7 = arith.constant 7 : index
    %c0_15 = arith.constant 0 : index
    %48 = vector.load %arg3[%c7, %c0_15] : memref<8x32xf32, #tpu.memory_space<vmem>>, vector<1x32xf32>
    tpu.vector_store %arg3[%c7, %c0_15], %47 {strides = array<i32>} : memref<8x32xf32, #tpu.memory_space<vmem>>, vector<1x32xf32>,
    return
  }
  func.func @transform_0(%arg0: i32, %arg1: memref<16xi32, #tpu.memory_space<smem>>) -> (i32, i32) {
    %c0_i32 = arith.constant 0 : i32
    %c0_i32_0 = arith.constant 0 : i32
    %c0_i32_1 = arith.constant 0 : i32
    return %c0_i32, %c0_i32_0 : i32, i32
  }
  func.func @transform_1(%arg0: i32, %arg1: memref<16xi32, #tpu.memory_space<smem>>) -> (i32, i32) {
    %c0_i32 = arith.constant 0 : i32
    %c0_i32_0 = arith.constant 0 : i32
    return %arg0, %c0_i32 : i32, i32
  }
}

module attributes {stable_mosaic.version = 11 : i64} {
  func.func @_final_kernel(%arg0: i32, %arg1: memref<8x32xf32, #tpu.memory_space<vmem>>, %arg2: memref<1x32xf32, #tpu.memory_space<vmem>>, %arg3: memref<32x64xbf16, #tpu.memory_space<vmem>>, %arg4: memref<8x64xf32, #tpu.memory_space<vmem>>) attributes {dimension_semantics = [#tpu.dimension_semantics<parallel>], iteration_bounds = array<i64: 2>, scalar_prefetch = 0 : i64, scratch_operands = 0 : i64, tpu.core_type = #tpu.core_type<tc>, window_params = [{transform_indices = @transform_0, window_bounds = array<i64: 8, 32>}, {pipeline_mode = #tpu.pipeline_mode<synchronous>, transform_indices = @transform_1, window_bounds = array<i64: 1, 32>}, {pipeline_mode = #tpu.pipeline_mode<synchronous>, transform_indices = @transform_2, window_bounds = array<i64: 32, 64>}, {transform_indices = @transform_3, window_bounds = array<i64: 8, 64>}]} {
    %c0 = arith.constant 0 : index
    %c0_0 = arith.constant 0 : index
    %0 = vector.load %arg1[%c0, %c0_0] : memref<8x32xf32, #tpu.memory_space<vmem>>, vector<8x32xf32>
    %1 = arith.mulf %0, %0 : vector<8x32xf32>
    %cst = arith.constant dense<0.000000e+00> : vector<8xf32>
    %2 = vector.multi_reduction <add>, %1, %cst [1] : vector<8x32xf32> to vector<8xf32>
    %3 = vector.shape_cast %2 : vector<8xf32> to vector<8x1xf32>
    %cst_1 = arith.constant 3.200000e+01 : f32
    %4 = vector.broadcast %cst_1 : f32 to vector<8x1xf32>
    %5 = arith.divf %3, %4 : vector<8x1xf32>
    %cst_2 = arith.constant 9.99999974E-6 : f32
    %6 = vector.broadcast %cst_2 : f32 to vector<8x1xf32>
    %7 = arith.addf %5, %6 : vector<8x1xf32>
    %8 = math.rsqrt %7 : vector<8x1xf32>
    %9 = vector.broadcast %8 : vector<8x1xf32> to vector<8x32xf32>
    %10 = arith.mulf %0, %9 : vector<8x32xf32>
    %c0_3 = arith.constant 0 : index
    %c0_4 = arith.constant 0 : index
    %11 = vector.load %arg2[%c0_3, %c0_4] : memref<1x32xf32, #tpu.memory_space<vmem>>, vector<1x32xf32>
    %12 = vector.broadcast %11 : vector<1x32xf32> to vector<8x32xf32>
    %13 = arith.mulf %10, %12 : vector<8x32xf32>
    %14 = arith.truncf %13 : vector<8x32xf32> to vector<8x32xbf16>
    %c0_5 = arith.constant 0 : index
    %c0_6 = arith.constant 0 : index
    %15 = vector.load %arg3[%c0_5, %c0_6] : memref<32x64xbf16, #tpu.memory_space<vmem>>, vector<32x64xbf16>
    %cst_7 = arith.constant dense<0.000000e+00> : vector<8x64xf32>
    %16 = tpu.matmul %14, %15, %cst_7 {dimension_numbers = #tpu.dot_dimension_numbers<[1], [0], [0], [1], [0, 0, 1, 1], [], []>} : vector<8x32xbf16>, vector<32x64xbf16>, vector<8x64xf32> -> vector<8x64xf32>
    %c0_8 = arith.constant 0 : index
    %c0_9 = arith.constant 0 : index
    %17 = vector.load %arg4[%c0_8, %c0_9] : memref<8x64xf32, #tpu.memory_space<vmem>>, vector<8x64xf32>
    tpu.vector_store %arg4[%c0_8, %c0_9], %16 {strides = array<i32>} : memref<8x64xf32, #tpu.memory_space<vmem>>, vector<8x64xf32>,
    return
  }
  func.func @transform_0(%arg0: i32) -> (i32, i32) {
    %c0_i32 = arith.constant 0 : i32
    %c0_i32_0 = arith.constant 0 : i32
    return %arg0, %c0_i32 : i32, i32
  }
  func.func @transform_1(%arg0: i32) -> (i32, i32) {
    %c0_i32 = arith.constant 0 : i32
    %c0_i32_0 = arith.constant 0 : i32
    %c0_i32_1 = arith.constant 0 : i32
    return %c0_i32, %c0_i32_0 : i32, i32
  }
  func.func @transform_2(%arg0: i32) -> (i32, i32) {
    %c0_i32 = arith.constant 0 : i32
    %c0_i32_0 = arith.constant 0 : i32
    %c0_i32_1 = arith.constant 0 : i32
    return %c0_i32, %c0_i32_0 : i32, i32
  }
  func.func @transform_3(%arg0: i32) -> (i32, i32) {
    %c0_i32 = arith.constant 0 : i32
    %c0_i32_0 = arith.constant 0 : i32
    return %arg0, %c0_i32 : i32, i32
  }
}

module attributes {stable_mosaic.version = 11 : i64} {
  func.func @_stack_kernel(%arg0: i32, %arg1: i32, %arg2: memref<1x8x32xf32, #tpu.memory_space<vmem>>, %arg3: memref<1x32x64xbf16, #tpu.memory_space<vmem>>, %arg4: memref<1x32x32xbf16, #tpu.memory_space<vmem>>, %arg5: memref<1x32x128xbf16, #tpu.memory_space<vmem>>, %arg6: memref<1x64x32xbf16, #tpu.memory_space<vmem>>, %arg7: memref<1x1x32xf32, #tpu.memory_space<vmem>>, %arg8: memref<1x1x32xf32, #tpu.memory_space<vmem>>, %arg9: memref<8x24xf32, #tpu.memory_space<vmem>>, %arg10: memref<8x24xf32, #tpu.memory_space<vmem>>, %arg11: memref<1x8x32xf32, #tpu.memory_space<vmem>>) attributes {dimension_semantics = [#tpu.dimension_semantics<parallel>, #tpu.dimension_semantics<arbitrary>], iteration_bounds = array<i64: 2, 2>, scalar_prefetch = 0 : i64, scratch_operands = 0 : i64, tpu.core_type = #tpu.core_type<tc>, window_params = [{transform_indices = @transform_0, window_bounds = array<i64: 1, 8, 32>}, {transform_indices = @transform_1, window_bounds = array<i64: 1, 32, 64>}, {transform_indices = @transform_2, window_bounds = array<i64: 1, 32, 32>}, {transform_indices = @transform_3, window_bounds = array<i64: 1, 32, 128>}, {transform_indices = @transform_4, window_bounds = array<i64: 1, 64, 32>}, {transform_indices = @transform_5, window_bounds = array<i64: 1, 1, 32>}, {transform_indices = @transform_6, window_bounds = array<i64: 1, 1, 32>}, {pipeline_mode = #tpu.pipeline_mode<synchronous>, transform_indices = @transform_7, window_bounds = array<i64: 8, 24>}, {pipeline_mode = #tpu.pipeline_mode<synchronous>, transform_indices = @transform_8, window_bounds = array<i64: 8, 24>}, {transform_indices = @transform_9, window_bounds = array<i64: 1, 8, 32>}]} {
    %c0_i32 = arith.constant 0 : i32
    %0 = arith.cmpi eq, %arg1, %c0_i32 : i32
    %1 = arith.extui %0 : i1 to i32
    %c0_i32_0 = arith.constant 0 : i32
    %2 = arith.cmpi ne, %1, %c0_i32_0 : i32
    scf.if %2 {
      %c0_56 = arith.constant 0 : index
      %c0_57 = arith.constant 0 : index
      %c0_58 = arith.constant 0 : index
      %161 = vector.load %arg2[%c0_56, %c0_57, %c0_58] : memref<1x8x32xf32, #tpu.memory_space<vmem>>, vector<1x8x32xf32>
      %162 = vector.shape_cast %161 : vector<1x8x32xf32> to vector<8x32xf32>
      %c0_59 = arith.constant 0 : index
      %c0_60 = arith.constant 0 : index
      %c0_61 = arith.constant 0 : index
      %163 = vector.load %arg11[%c0_59, %c0_60, %c0_61] : memref<1x8x32xf32, #tpu.memory_space<vmem>>, vector<1x8x32xf32>
      %164 = vector.shape_cast %163 : vector<1x8x32xf32> to vector<8x32xf32>
      %165 = vector.shape_cast %162 : vector<8x32xf32> to vector<1x8x32xf32>
      tpu.vector_store %arg11[%c0_59, %c0_60, %c0_61], %165 {strides = array<i32>} : memref<1x8x32xf32, #tpu.memory_space<vmem>>, vector<1x8x32xf32>,
    } else {
    }
    %c0 = arith.constant 0 : index
    %c0_1 = arith.constant 0 : index
    %c0_2 = arith.constant 0 : index
    %3 = vector.load %arg11[%c0, %c0_1, %c0_2] : memref<1x8x32xf32, #tpu.memory_space<vmem>>, vector<1x8x32xf32>
    %4 = vector.shape_cast %3 : vector<1x8x32xf32> to vector<8x32xf32>
    %5 = arith.mulf %4, %4 : vector<8x32xf32>
    %cst = arith.constant dense<0.000000e+00> : vector<8xf32>
    %6 = vector.multi_reduction <add>, %5, %cst [1] : vector<8x32xf32> to vector<8xf32>
    %7 = vector.shape_cast %6 : vector<8xf32> to vector<8x1xf32>
    %cst_3 = arith.constant 3.200000e+01 : f32
    %8 = vector.broadcast %cst_3 : f32 to vector<8x1xf32>
    %9 = arith.divf %7, %8 : vector<8x1xf32>
    %cst_4 = arith.constant 9.99999974E-6 : f32
    %10 = vector.broadcast %cst_4 : f32 to vector<8x1xf32>
    %11 = arith.addf %9, %10 : vector<8x1xf32>
    %12 = math.rsqrt %11 : vector<8x1xf32>
    %13 = vector.broadcast %12 : vector<8x1xf32> to vector<8x32xf32>
    %14 = arith.mulf %4, %13 : vector<8x32xf32>
    %c0_5 = arith.constant 0 : index
    %c0_6 = arith.constant 0 : index
    %c0_7 = arith.constant 0 : index
    %15 = vector.load %arg7[%c0_5, %c0_6, %c0_7] : memref<1x1x32xf32, #tpu.memory_space<vmem>>, vector<1x1x32xf32>
    %16 = vector.shape_cast %15 : vector<1x1x32xf32> to vector<1x32xf32>
    %17 = vector.broadcast %16 : vector<1x32xf32> to vector<8x32xf32>
    %18 = arith.mulf %14, %17 : vector<8x32xf32>
    %19 = arith.truncf %18 : vector<8x32xf32> to vector<8x32xbf16>
    %c0_8 = arith.constant 0 : index
    %c0_9 = arith.constant 0 : index
    %c0_10 = arith.constant 0 : index
    %20 = vector.load %arg3[%c0_8, %c0_9, %c0_10] : memref<1x32x64xbf16, #tpu.memory_space<vmem>>, vector<1x32x64xbf16>
    %21 = vector.shape_cast %20 : vector<1x32x64xbf16> to vector<32x64xbf16>
    %cst_11 = arith.constant dense<0.000000e+00> : vector<8x64xf32>
    %22 = tpu.matmul %19, %21, %cst_11 {dimension_numbers = #tpu.dot_dimension_numbers<[1], [0], [0], [1], [0, 0, 1, 1], [], []>} : vector<8x32xbf16>, vector<32x64xbf16>, vector<8x64xf32> -> vector<8x64xf32>
    %c0_12 = arith.constant 0 : index
    %c0_13 = arith.constant 0 : index
    %23 = vector.load %arg9[%c0_12, %c0_13] : memref<8x24xf32, #tpu.memory_space<vmem>>, vector<8x24xf32>
    %c0_14 = arith.constant 0 : index
    %c0_15 = arith.constant 0 : index
    %24 = vector.load %arg10[%c0_14, %c0_15] : memref<8x24xf32, #tpu.memory_space<vmem>>, vector<8x24xf32>
    %25 = vector.extract_strided_slice %22 {offsets = [0, 0], sizes = [8, 24], strides = [1, 1]} : vector<8x64xf32> to vector<8x24xf32>
    %26 = vector.extract_strided_slice %22 {offsets = [0, 24], sizes = [8, 24], strides = [1, 1]} : vector<8x64xf32> to vector<8x24xf32>
    %27 = arith.mulf %25, %23 : vector<8x24xf32>
    %28 = arith.mulf %26, %24 : vector<8x24xf32>
    %29 = arith.subf %27, %28 : vector<8x24xf32>
    %30 = arith.mulf %26, %23 : vector<8x24xf32>
    %31 = arith.mulf %25, %24 : vector<8x24xf32>
    %32 = arith.addf %30, %31 : vector<8x24xf32>
    %33 = vector.extract_strided_slice %22 {offsets = [0, 48], sizes = [8, 16], strides = [1, 1]} : vector<8x64xf32> to vector<8x16xf32>
    %34 = tpu.iota {dimensions = array<i32: 0>} : vector<8x8xi32>
    %35 = tpu.iota {dimensions = array<i32: 1>} : vector<8x8xi32>
    %36 = arith.cmpi sle, %35, %34 : vector<8x8xi32>
    %cst_16 = arith.constant 0.000000e+00 : f32
    %cst_17 = arith.constant -1.000000e+30 : f32
    %37 = vector.broadcast %cst_16 : f32 to vector<8x8xf32>
    %38 = vector.broadcast %cst_17 : f32 to vector<8x8xf32>
    %39 = arith.select %36, %37, %38 : vector<8x8xi1>, vector<8x8xf32>
    %40 = vector.extract_strided_slice %29 {offsets = [0, 0], sizes = [8, 4], strides = [1, 1]} : vector<8x24xf32> to vector<8x4xf32>
    %41 = vector.extract_strided_slice %32 {offsets = [0, 0], sizes = [8, 4], strides = [1, 1]} : vector<8x24xf32> to vector<8x4xf32>
    %42 = tpu.concatenate %40, %41 in 1 : vector<8x4xf32>, vector<8x4xf32> -> vector<8x8xf32>
    %43 = vector.extract_strided_slice %29 {offsets = [0, 16], sizes = [8, 4], strides = [1, 1]} : vector<8x24xf32> to vector<8x4xf32>
    %44 = vector.extract_strided_slice %32 {offsets = [0, 16], sizes = [8, 4], strides = [1, 1]} : vector<8x24xf32> to vector<8x4xf32>
    %45 = tpu.concatenate %43, %44 in 1 : vector<8x4xf32>, vector<8x4xf32> -> vector<8x8xf32>
    %46 = vector.extract_strided_slice %33 {offsets = [0, 0], sizes = [8, 8], strides = [1, 1]} : vector<8x16xf32> to vector<8x8xf32>
    %cst_18 = arith.constant dense<0.000000e+00> : vector<8x8xf32>
    %47 = tpu.matmul %42, %45, %cst_18 {dimension_numbers = #tpu.dot_dimension_numbers<[1], [1], [0], [0], [0, 0, 1, 0], [], []>} : vector<8x8xf32>, vector<8x8xf32>, vector<8x8xf32> -> vector<8x8xf32>
    %48 = arith.addf %47, %39 : vector<8x8xf32>
    %cst_19 = arith.constant dense<0xFF800000> : vector<8xf32>
    %49 = vector.multi_reduction <maximumf>, %48, %cst_19 [1] : vector<8x8xf32> to vector<8xf32>
    %50 = vector.shape_cast %49 : vector<8xf32> to vector<8x1xf32>
    %51 = vector.broadcast %50 : vector<8x1xf32> to vector<8x8xf32>
    %52 = arith.subf %48, %51 : vector<8x8xf32>
    %53 = math.exp %52 : vector<8x8xf32>
    %cst_20 = arith.constant dense<0.000000e+00> : vector<8xf32>
    %54 = vector.multi_reduction <add>, %53, %cst_20 [1] : vector<8x8xf32> to vector<8xf32>
    %55 = vector.shape_cast %54 : vector<8xf32> to vector<8x1xf32>
    %56 = tpu.reciprocal %55 {approx = true} : vector<8x1xf32> -> vector<8x1xf32>
    %57 = vector.broadcast %56 : vector<8x1xf32> to vector<8x8xf32>
    %58 = arith.mulf %53, %57 : vector<8x8xf32>
    %cst_21 = arith.constant dense<0.000000e+00> : vector<8x8xf32>
    %59 = tpu.matmul %58, %46, %cst_21 {dimension_numbers = #tpu.dot_dimension_numbers<[1], [0], [0], [1], [0, 0, 1, 1], [], []>} : vector<8x8xf32>, vector<8x8xf32>, vector<8x8xf32> -> vector<8x8xf32>
    %60 = vector.extract_strided_slice %29 {offsets = [0, 4], sizes = [8, 4], strides = [1, 1]} : vector<8x24xf32> to vector<8x4xf32>
    %61 = vector.extract_strided_slice %32 {offsets = [0, 4], sizes = [8, 4], strides = [1, 1]} : vector<8x24xf32> to vector<8x4xf32>
    %62 = tpu.concatenate %60, %61 in 1 : vector<8x4xf32>, vector<8x4xf32> -> vector<8x8xf32>
    %63 = vector.extract_strided_slice %29 {offsets = [0, 16], sizes = [8, 4], strides = [1, 1]} : vector<8x24xf32> to vector<8x4xf32>
    %64 = vector.extract_strided_slice %32 {offsets = [0, 16], sizes = [8, 4], strides = [1, 1]} : vector<8x24xf32> to vector<8x4xf32>
    %65 = tpu.concatenate %63, %64 in 1 : vector<8x4xf32>, vector<8x4xf32> -> vector<8x8xf32>
    %66 = vector.extract_strided_slice %33 {offsets = [0, 0], sizes = [8, 8], strides = [1, 1]} : vector<8x16xf32> to vector<8x8xf32>
    %cst_22 = arith.constant dense<0.000000e+00> : vector<8x8xf32>
    %67 = tpu.matmul %62, %65, %cst_22 {dimension_numbers = #tpu.dot_dimension_numbers<[1], [1], [0], [0], [0, 0, 1, 0], [], []>} : vector<8x8xf32>, vector<8x8xf32>, vector<8x8xf32> -> vector<8x8xf32>
    %68 = arith.addf %67, %39 : vector<8x8xf32>
    %cst_23 = arith.constant dense<0xFF800000> : vector<8xf32>
    %69 = vector.multi_reduction <maximumf>, %68, %cst_23 [1] : vector<8x8xf32> to vector<8xf32>
    %70 = vector.shape_cast %69 : vector<8xf32> to vector<8x1xf32>
    %71 = vector.broadcast %70 : vector<8x1xf32> to vector<8x8xf32>
    %72 = arith.subf %68, %71 : vector<8x8xf32>
    %73 = math.exp %72 : vector<8x8xf32>
    %cst_24 = arith.constant dense<0.000000e+00> : vector<8xf32>
    %74 = vector.multi_reduction <add>, %73, %cst_24 [1] : vector<8x8xf32> to vector<8xf32>
    %75 = vector.shape_cast %74 : vector<8xf32> to vector<8x1xf32>
    %76 = tpu.reciprocal %75 {approx = true} : vector<8x1xf32> -> vector<8x1xf32>
    %77 = vector.broadcast %76 : vector<8x1xf32> to vector<8x8xf32>
    %78 = arith.mulf %73, %77 : vector<8x8xf32>
    %cst_25 = arith.constant dense<0.000000e+00> : vector<8x8xf32>
    %79 = tpu.matmul %78, %66, %cst_25 {dimension_numbers = #tpu.dot_dimension_numbers<[1], [0], [0], [1], [0, 0, 1, 1], [], []>} : vector<8x8xf32>, vector<8x8xf32>, vector<8x8xf32> -> vector<8x8xf32>
    %80 = vector.extract_strided_slice %29 {offsets = [0, 8], sizes = [8, 4], strides = [1, 1]} : vector<8x24xf32> to vector<8x4xf32>
    %81 = vector.extract_strided_slice %32 {offsets = [0, 8], sizes = [8, 4], strides = [1, 1]} : vector<8x24xf32> to vector<8x4xf32>
    %82 = tpu.concatenate %80, %81 in 1 : vector<8x4xf32>, vector<8x4xf32> -> vector<8x8xf32>
    %83 = vector.extract_strided_slice %29 {offsets = [0, 20], sizes = [8, 4], strides = [1, 1]} : vector<8x24xf32> to vector<8x4xf32>
    %84 = vector.extract_strided_slice %32 {offsets = [0, 20], sizes = [8, 4], strides = [1, 1]} : vector<8x24xf32> to vector<8x4xf32>
    %85 = tpu.concatenate %83, %84 in 1 : vector<8x4xf32>, vector<8x4xf32> -> vector<8x8xf32>
    %86 = vector.extract_strided_slice %33 {offsets = [0, 8], sizes = [8, 8], strides = [1, 1]} : vector<8x16xf32> to vector<8x8xf32>
    %cst_26 = arith.constant dense<0.000000e+00> : vector<8x8xf32>
    %87 = tpu.matmul %82, %85, %cst_26 {dimension_numbers = #tpu.dot_dimension_numbers<[1], [1], [0], [0], [0, 0, 1, 0], [], []>} : vector<8x8xf32>, vector<8x8xf32>, vector<8x8xf32> -> vector<8x8xf32>
    %88 = arith.addf %87, %39 : vector<8x8xf32>
    %cst_27 = arith.constant dense<0xFF800000> : vector<8xf32>
    %89 = vector.multi_reduction <maximumf>, %88, %cst_27 [1] : vector<8x8xf32> to vector<8xf32>
    %90 = vector.shape_cast %89 : vector<8xf32> to vector<8x1xf32>
    %91 = vector.broadcast %90 : vector<8x1xf32> to vector<8x8xf32>
    %92 = arith.subf %88, %91 : vector<8x8xf32>
    %93 = math.exp %92 : vector<8x8xf32>
    %cst_28 = arith.constant dense<0.000000e+00> : vector<8xf32>
    %94 = vector.multi_reduction <add>, %93, %cst_28 [1] : vector<8x8xf32> to vector<8xf32>
    %95 = vector.shape_cast %94 : vector<8xf32> to vector<8x1xf32>
    %96 = tpu.reciprocal %95 {approx = true} : vector<8x1xf32> -> vector<8x1xf32>
    %97 = vector.broadcast %96 : vector<8x1xf32> to vector<8x8xf32>
    %98 = arith.mulf %93, %97 : vector<8x8xf32>
    %cst_29 = arith.constant dense<0.000000e+00> : vector<8x8xf32>
    %99 = tpu.matmul %98, %86, %cst_29 {dimension_numbers = #tpu.dot_dimension_numbers<[1], [0], [0], [1], [0, 0, 1, 1], [], []>} : vector<8x8xf32>, vector<8x8xf32>, vector<8x8xf32> -> vector<8x8xf32>
    %100 = vector.extract_strided_slice %29 {offsets = [0, 12], sizes = [8, 4], strides = [1, 1]} : vector<8x24xf32> to vector<8x4xf32>
    %101 = vector.extract_strided_slice %32 {offsets = [0, 12], sizes = [8, 4], strides = [1, 1]} : vector<8x24xf32> to vector<8x4xf32>
    %102 = tpu.concatenate %100, %101 in 1 : vector<8x4xf32>, vector<8x4xf32> -> vector<8x8xf32>
    %103 = vector.extract_strided_slice %29 {offsets = [0, 20], sizes = [8, 4], strides = [1, 1]} : vector<8x24xf32> to vector<8x4xf32>
    %104 = vector.extract_strided_slice %32 {offsets = [0, 20], sizes = [8, 4], strides = [1, 1]} : vector<8x24xf32> to vector<8x4xf32>
    %105 = tpu.concatenate %103, %104 in 1 : vector<8x4xf32>, vector<8x4xf32> -> vector<8x8xf32>
    %106 = vector.extract_strided_slice %33 {offsets = [0, 8], sizes = [8, 8], strides = [1, 1]} : vector<8x16xf32> to vector<8x8xf32>
    %cst_30 = arith.constant dense<0.000000e+00> : vector<8x8xf32>
    %107 = tpu.matmul %102, %105, %cst_30 {dimension_numbers = #tpu.dot_dimension_numbers<[1], [1], [0], [0], [0, 0, 1, 0], [], []>} : vector<8x8xf32>, vector<8x8xf32>, vector<8x8xf32> -> vector<8x8xf32>
    %108 = arith.addf %107, %39 : vector<8x8xf32>
    %cst_31 = arith.constant dense<0xFF800000> : vector<8xf32>
    %109 = vector.multi_reduction <maximumf>, %108, %cst_31 [1] : vector<8x8xf32> to vector<8xf32>
    %110 = vector.shape_cast %109 : vector<8xf32> to vector<8x1xf32>
    %111 = vector.broadcast %110 : vector<8x1xf32> to vector<8x8xf32>
    %112 = arith.subf %108, %111 : vector<8x8xf32>
    %113 = math.exp %112 : vector<8x8xf32>
    %cst_32 = arith.constant dense<0.000000e+00> : vector<8xf32>
    %114 = vector.multi_reduction <add>, %113, %cst_32 [1] : vector<8x8xf32> to vector<8xf32>
    %115 = vector.shape_cast %114 : vector<8xf32> to vector<8x1xf32>
    %116 = tpu.reciprocal %115 {approx = true} : vector<8x1xf32> -> vector<8x1xf32>
    %117 = vector.broadcast %116 : vector<8x1xf32> to vector<8x8xf32>
    %118 = arith.mulf %113, %117 : vector<8x8xf32>
    %cst_33 = arith.constant dense<0.000000e+00> : vector<8x8xf32>
    %119 = tpu.matmul %118, %106, %cst_33 {dimension_numbers = #tpu.dot_dimension_numbers<[1], [0], [0], [1], [0, 0, 1, 1], [], []>} : vector<8x8xf32>, vector<8x8xf32>, vector<8x8xf32> -> vector<8x8xf32>
    %120 = tpu.concatenate %59, %79, %99, %119 in 1 : vector<8x8xf32>, vector<8x8xf32>, vector<8x8xf32>, vector<8x8xf32> -> vector<8x32xf32>
    %121 = arith.truncf %120 : vector<8x32xf32> to vector<8x32xbf16>
    %c0_34 = arith.constant 0 : index
    %c0_35 = arith.constant 0 : index
    %c0_36 = arith.constant 0 : index
    %122 = vector.load %arg4[%c0_34, %c0_35, %c0_36] : memref<1x32x32xbf16, #tpu.memory_space<vmem>>, vector<1x32x32xbf16>
    %123 = vector.shape_cast %122 : vector<1x32x32xbf16> to vector<32x32xbf16>
    %cst_37 = arith.constant dense<0.000000e+00> : vector<8x32xf32>
    %124 = tpu.matmul %121, %123, %cst_37 {dimension_numbers = #tpu.dot_dimension_numbers<[1], [0], [0], [1], [0, 0, 1, 1], [], []>} : vector<8x32xbf16>, vector<32x32xbf16>, vector<8x32xf32> -> vector<8x32xf32>
    %125 = arith.addf %4, %124 : vector<8x32xf32>
    %126 = arith.mulf %125, %125 : vector<8x32xf32>
    %cst_38 = arith.constant dense<0.000000e+00> : vector<8xf32>
    %127 = vector.multi_reduction <add>, %126, %cst_38 [1] : vector<8x32xf32> to vector<8xf32>
    %128 = vector.shape_cast %127 : vector<8xf32> to vector<8x1xf32>
    %cst_39 = arith.constant 3.200000e+01 : f32
    %129 = vector.broadcast %cst_39 : f32 to vector<8x1xf32>
    %130 = arith.divf %128, %129 : vector<8x1xf32>
    %cst_40 = arith.constant 9.99999974E-6 : f32
    %131 = vector.broadcast %cst_40 : f32 to vector<8x1xf32>
    %132 = arith.addf %130, %131 : vector<8x1xf32>
    %133 = math.rsqrt %132 : vector<8x1xf32>
    %134 = vector.broadcast %133 : vector<8x1xf32> to vector<8x32xf32>
    %135 = arith.mulf %125, %134 : vector<8x32xf32>
    %c0_41 = arith.constant 0 : index
    %c0_42 = arith.constant 0 : index
    %c0_43 = arith.constant 0 : index
    %136 = vector.load %arg8[%c0_41, %c0_42, %c0_43] : memref<1x1x32xf32, #tpu.memory_space<vmem>>, vector<1x1x32xf32>
    %137 = vector.shape_cast %136 : vector<1x1x32xf32> to vector<1x32xf32>
    %138 = vector.broadcast %137 : vector<1x32xf32> to vector<8x32xf32>
    %139 = arith.mulf %135, %138 : vector<8x32xf32>
    %140 = arith.truncf %139 : vector<8x32xf32> to vector<8x32xbf16>
    %c0_44 = arith.constant 0 : index
    %c0_45 = arith.constant 0 : index
    %c0_46 = arith.constant 0 : index
    %141 = vector.load %arg5[%c0_44, %c0_45, %c0_46] : memref<1x32x128xbf16, #tpu.memory_space<vmem>>, vector<1x32x128xbf16>
    %142 = vector.shape_cast %141 : vector<1x32x128xbf16> to vector<32x128xbf16>
    %cst_47 = arith.constant dense<0.000000e+00> : vector<8x128xf32>
    %143 = tpu.matmul %140, %142, %cst_47 {dimension_numbers = #tpu.dot_dimension_numbers<[1], [0], [0], [1], [0, 0, 1, 1], [], []>} : vector<8x32xbf16>, vector<32x128xbf16>, vector<8x128xf32> -> vector<8x128xf32>
    %144 = vector.extract_strided_slice %143 {offsets = [0, 0], sizes = [8, 64], strides = [1, 1]} : vector<8x128xf32> to vector<8x64xf32>
    %145 = vector.extract_strided_slice %143 {offsets = [0, 64], sizes = [8, 64], strides = [1, 1]} : vector<8x128xf32> to vector<8x64xf32>
    %146 = arith.negf %144 : vector<8x64xf32>
    %147 = math.exp %146 : vector<8x64xf32>
    %cst_48 = arith.constant 1.000000e+00 : f32
    %148 = vector.broadcast %cst_48 : f32 to vector<8x64xf32>
    %149 = arith.addf %148, %147 : vector<8x64xf32>
    %150 = arith.divf %148, %149 : vector<8x64xf32>
    %151 = arith.mulf %144, %150 : vector<8x64xf32>
    %152 = arith.mulf %151, %145 : vector<8x64xf32>
    %153 = arith.truncf %152 : vector<8x64xf32> to vector<8x64xbf16>
    %c0_49 = arith.constant 0 : index
    %c0_50 = arith.constant 0 : index
    %c0_51 = arith.constant 0 : index
    %154 = vector.load %arg6[%c0_49, %c0_50, %c0_51] : memref<1x64x32xbf16, #tpu.memory_space<vmem>>, vector<1x64x32xbf16>
    %155 = vector.shape_cast %154 : vector<1x64x32xbf16> to vector<64x32xbf16>
    %cst_52 = arith.constant dense<0.000000e+00> : vector<8x32xf32>
    %156 = tpu.matmul %153, %155, %cst_52 {dimension_numbers = #tpu.dot_dimension_numbers<[1], [0], [0], [1], [0, 0, 1, 1], [], []>} : vector<8x64xbf16>, vector<64x32xbf16>, vector<8x32xf32> -> vector<8x32xf32>
    %157 = arith.addf %125, %156 : vector<8x32xf32>
    %c0_53 = arith.constant 0 : index
    %c0_54 = arith.constant 0 : index
    %c0_55 = arith.constant 0 : index
    %158 = vector.load %arg11[%c0_53, %c0_54, %c0_55] : memref<1x8x32xf32, #tpu.memory_space<vmem>>, vector<1x8x32xf32>
    %159 = vector.shape_cast %158 : vector<1x8x32xf32> to vector<8x32xf32>
    %160 = vector.shape_cast %157 : vector<8x32xf32> to vector<1x8x32xf32>
    tpu.vector_store %arg11[%c0_53, %c0_54, %c0_55], %160 {strides = array<i32>} : memref<1x8x32xf32, #tpu.memory_space<vmem>>, vector<1x8x32xf32>,
    return
  }
  func.func @transform_0(%arg0: i32, %arg1: i32) -> (i32, i32, i32) {
    %c0_i32 = arith.constant 0 : i32
    %c0_i32_0 = arith.constant 0 : i32
    %c0_i32_1 = arith.constant 0 : i32
    return %arg0, %c0_i32, %c0_i32_0 : i32, i32, i32
  }
  func.func @transform_1(%arg0: i32, %arg1: i32) -> (i32, i32, i32) {
    %c0_i32 = arith.constant 0 : i32
    %c0_i32_0 = arith.constant 0 : i32
    %c0_i32_1 = arith.constant 0 : i32
    return %arg1, %c0_i32, %c0_i32_0 : i32, i32, i32
  }
  func.func @transform_2(%arg0: i32, %arg1: i32) -> (i32, i32, i32) {
    %c0_i32 = arith.constant 0 : i32
    %c0_i32_0 = arith.constant 0 : i32
    %c0_i32_1 = arith.constant 0 : i32
    return %arg1, %c0_i32, %c0_i32_0 : i32, i32, i32
  }
  func.func @transform_3(%arg0: i32, %arg1: i32) -> (i32, i32, i32) {
    %c0_i32 = arith.constant 0 : i32
    %c0_i32_0 = arith.constant 0 : i32
    %c0_i32_1 = arith.constant 0 : i32
    return %arg1, %c0_i32, %c0_i32_0 : i32, i32, i32
  }
  func.func @transform_4(%arg0: i32, %arg1: i32) -> (i32, i32, i32) {
    %c0_i32 = arith.constant 0 : i32
    %c0_i32_0 = arith.constant 0 : i32
    %c0_i32_1 = arith.constant 0 : i32
    return %arg1, %c0_i32, %c0_i32_0 : i32, i32, i32
  }
  func.func @transform_5(%arg0: i32, %arg1: i32) -> (i32, i32, i32) {
    %c0_i32 = arith.constant 0 : i32
    %c0_i32_0 = arith.constant 0 : i32
    %c0_i32_1 = arith.constant 0 : i32
    return %arg1, %c0_i32, %c0_i32_0 : i32, i32, i32
  }
  func.func @transform_6(%arg0: i32, %arg1: i32) -> (i32, i32, i32) {
    %c0_i32 = arith.constant 0 : i32
    %c0_i32_0 = arith.constant 0 : i32
    %c0_i32_1 = arith.constant 0 : i32
    return %arg1, %c0_i32, %c0_i32_0 : i32, i32, i32
  }
  func.func @transform_7(%arg0: i32, %arg1: i32) -> (i32, i32) {
    %c0_i32 = arith.constant 0 : i32
    %c0_i32_0 = arith.constant 0 : i32
    %c0_i32_1 = arith.constant 0 : i32
    return %c0_i32, %c0_i32_0 : i32, i32
  }
  func.func @transform_8(%arg0: i32, %arg1: i32) -> (i32, i32) {
    %c0_i32 = arith.constant 0 : i32
    %c0_i32_0 = arith.constant 0 : i32
    %c0_i32_1 = arith.constant 0 : i32
    return %c0_i32, %c0_i32_0 : i32, i32
  }
  func.func @transform_9(%arg0: i32, %arg1: i32) -> (i32, i32, i32) {
    %c0_i32 = arith.constant 0 : i32
    %c0_i32_0 = arith.constant 0 : i32
    %c0_i32_1 = arith.constant 0 : i32
    return %arg0, %c0_i32, %c0_i32_0 : i32, i32, i32
  }
}

</mosaic_0001>

<llo_original>
// kernel: transformer_forward.5
$region0: #{transformer_forward.5}
  #allocation0 [shape = 'u32[]', space=smem, size = 0x4, offset = 0x4, fixed_abs, tag = 'smem constant byte address 0x4 - core index']
  #allocation1 [shape = 'u32[72,128]{1,0:T(1,128)}', space=vmem, size = 0x9000, scoped, tag = 'internal scratch']
  %s0 = inlined_call_operand.vmem [shape: f32[16,32], index: 0, kind: input, shape index: {}]
  %s1 = inlined_call_operand.vmem [shape: f32[1,32], index: 1, kind: input, shape index: {}]
  %s2 = inlined_call_operand.vmem [shape: bf16[32,64], index: 2, kind: input, shape index: {}]
  %s3 = inlined_call_operand.hbm [shape: f32[16,64], index: 3, kind: output, shape index: {}]
  %s4 = sld [smem:[#allocation0]]
  $region45: #{transformer_forward.5} parent=0
    _
  %s6 = ssub.s32 1, %s4
  %s7 = scalar_select 0, %s6, %s4
  $region1: #{transformer_forward.5} parent=0
    #allocation2 [shape = 'u8[8192]{0}', space=vmem, size = 0x2000, scoped, tag = 'output window, operand 0']
    #allocation3 [shape = 's32[2]{0}', space=sflag, size = 0x8, scoped, tag = 'scoped memory for transformer_forward.5']
    %8 = vsyncpa [#allocation3], 0
    %s9 = scalar_lea.sflag [#allocation3], 1
    %10 = vsyncpa %s9, 0
    loop: start=0, step=1, limit=4
    $region2: #{transformer_forward.5} parent=1 // loop_pre_header
      _
    $region3: #{transformer_forward.5} parent=1 // loop_header
      %s12 = sphi 0, %s16
      %p13 = scmp.ge.s32.totalorder %s12, 4
      %s22 = sphi 0, %s24
      %s25 = sphi 0, %s22
      %s26 = sphi 0, %s25
      %s42 = sphi 0, %s26
      %s46 = sphi 0, %s46
      %s48 = sphi 0, %s46
      %s49 = sphi 0, %s48
      %s63 = sphi 0, %s49
      %s67 = sphi 0, %s67
      %s69 = sphi 0, %s67
      %s70 = sphi 0, %s69
      %s84 = sphi 0, %s70
      %s90 = sphi 0, %s92
      %s93 = sphi 0, %s90
      %s94 = sphi 0, %s93
      %s110 = sphi 0, %s94
    $region4: #{transformer_forward.5} parent=1 // loop_header_branch
      %15 = sbr.rel (%p13) target = $region8
    $region5: #{transformer_forward.5} parent=1 // loop_body
      %s17 = ssub.s32 %s12, 1
      %s18 = ssub.s32 %s12, 2
      %s19 = sadd.s32 %s12, 1
      %s20 = ssub.s32 %s12, %s19
      %p21 = scmp.eq.s32.totalorder %s20, 0
      %s23 = sadd.s32 %s22, 1
      %s24 = scalar_select %p21, %s22, %s23
      %p27 = pneg %p21
      %p28 = scmp.eq.s32.totalorder %s12, 1
      %p29 = por %p27, %p28
      %p30 = scmp.ne.s32.totalorder %s22, %s25
      %p31 = scmp.eq.s32.totalorder %s12, 0
      %p32 = por %p30, %p31
      %p33 = scmp.ne.s32.totalorder %s22, %s25
      %p34 = scmp.eq.s32.totalorder %s17, 1
      %p35 = por %p33, %p34
      %p36 = scmp.ne.s32.totalorder %s25, %s26
      %p37 = scmp.eq.s32.totalorder %s17, 0
      %p38 = por %p36, %p37
      %p39 = scmp.ne.s32.totalorder %s25, %s26
      %p40 = scmp.eq.s32.totalorder %s18, 1
      %p41 = por %p39, %p40
      %p43 = scmp.ne.s32.totalorder %s26, %s42
      %p44 = scmp.eq.s32.totalorder %s18, 0
      %p45 = por %p43, %p44
      %s47 = sadd.s32 %s46, 1
      %p50 = scmp.eq.s32.totalorder %s12, 1
      %p51 = scmp.ne.s32.totalorder %s46, %s48
      %p52 = scmp.eq.s32.totalorder %s12, 0
      %p53 = por %p51, %p52
      %p54 = scmp.ne.s32.totalorder %s46, %s48
      %p55 = scmp.eq.s32.totalorder %s17, 1
      %p56 = por %p54, %p55
      %p57 = scmp.ne.s32.totalorder %s48, %s49
      %p58 = scmp.eq.s32.totalorder %s17, 0
      %p59 = por %p57, %p58
      %p60 = scmp.ne.s32.totalorder %s48, %s49
      %p61 = scmp.eq.s32.totalorder %s18, 1
      %p62 = por %p60, %p61
      %p64 = scmp.ne.s32.totalorder %s49, %s63
      %p65 = scmp.eq.s32.totalorder %s18, 0
      %p66 = por %p64, %p65
      %s68 = sadd.s32 %s67, 1
      %p71 = scmp.eq.s32.totalorder %s12, 1
      %p72 = scmp.ne.s32.totalorder %s67, %s69
      %p73 = scmp.eq.s32.totalorder %s12, 0
      %p74 = por %p72, %p73
      %p75 = scmp.ne.s32.totalorder %s67, %s69
      %p76 = scmp.eq.s32.totalorder %s17, 1
      %p77 = por %p75, %p76
      %p78 = scmp.ne.s32.totalorder %s69, %s70
      %p79 = scmp.eq.s32.totalorder %s17, 0
      %p80 = por %p78, %p79
      %p81 = scmp.ne.s32.totalorder %s69, %s70
      %p82 = scmp.eq.s32.totalorder %s18, 1
      %p83 = por %p81, %p82
      %p85 = scmp.ne.s32.totalorder %s70, %s84
      %p86 = scmp.eq.s32.totalorder %s18, 0
      %p87 = por %p85, %p86
      %s88 = ssub.s32 %s12, %s19
      %p89 = scmp.eq.s32.totalorder %s88, 0
      %s91 = sadd.s32 %s90, 1
      %s92 = scalar_select %p89, %s90, %s91
      %p95 = pneg %p89
      %p96 = scmp.eq.s32.totalorder %s12, 1
      %p97 = por %p95, %p96
      %p98 = scmp.ne.s32.totalorder %s90, %s93
      %p99 = scmp.eq.s32.totalorder %s12, 0
      %p100 = por %p98, %p99
      %p101 = scmp.ne.s32.totalorder %s90, %s93
      %p102 = scmp.eq.s32.totalorder %s17, 1
      %p103 = por %p101, %p102
      %p104 = scmp.ne.s32.totalorder %s93, %s94
      %p105 = scmp.eq.s32.totalorder %s17, 0
      %p106 = por %p104, %p105
      %p107 = scmp.ne.s32.totalorder %s93, %s94
      %p108 = scmp.eq.s32.totalorder %s18, 1
      %p109 = por %p107, %p108
      %p111 = scmp.ne.s32.totalorder %s94, %s110
      %p112 = scmp.eq.s32.totalorder %s18, 0
      %p113 = por %p111, %p112
      %p114 = scmp.le.s32.totalorder 1, %s12
      %p115 = scmp.lt.s32.totalorder %s12, 3
      %p116 = pnand %p114, %p115
      %p117 = pneg %p116
      // Predicated region
      $region9: #{transformer_forward.5} parent=5 // pred_check
        _
      $region10: #{transformer_forward.5} parent=5 // pred_check_branch
        %119 = sbr.rel (%p116) target = $region12
      $region11: #{transformer_forward.5} parent=5 // pred_region
        %s120 = ssub.s32 %s12, 1
        // Predicated region
        $region13: #{transformer_forward.5} parent=11 // pred_check
          %p121 = pneg %p59
        $region14: #{transformer_forward.5} parent=11 // pred_check_branch
          %123 = sbr.rel (%p121) target = $region16
        $region15: #{transformer_forward.5} parent=11 // pred_region
          _
        $region16: #{transformer_forward.5} parent=11 // pred_fallthru
          _
        // Predicated region
        $region17: #{transformer_forward.5} parent=11 // pred_check
          %p124 = pneg %p80
        $region18: #{transformer_forward.5} parent=11 // pred_check_branch
          %126 = sbr.rel (%p124) target = $region20
        $region19: #{transformer_forward.5} parent=11 // pred_region
          _
        $region20: #{transformer_forward.5} parent=11 // pred_fallthru
          _
      $region12: #{transformer_forward.5} parent=5 // pred_fallthru
        _
      %p127 = scmp.lt.s32.totalorder %s12, 2
      // Predicated region
      $region21: #{transformer_forward.5} parent=5 // pred_check
        %p128 = pneg %p127
      $region22: #{transformer_forward.5} parent=5 // pred_check_branch
        %130 = sbr.rel (%p128) target = $region24
      $region23: #{transformer_forward.5} parent=5 // pred_region
        // Predicated region
        $region25: #{transformer_forward.5} parent=23 // pred_check
          %p131 = pneg %p32
        $region26: #{transformer_forward.5} parent=23 // pred_check_branch
          %133 = sbr.rel (%p131) target = $region28
        $region27: #{transformer_forward.5} parent=23 // pred_region
          %p134 = scmp.lt.s32.totalorder %s12, 1
          %s135 = scalar_select %p134, %s12, 1
          %s136 = smul.addr %s135, 8
          %s137 = scalar_lea.vmem %s0, %s136
        $region28: #{transformer_forward.5} parent=23 // pred_fallthru
          _
      $region24: #{transformer_forward.5} parent=5 // pred_fallthru
        _
      %p138 = scmp.le.s32.totalorder 1, %s12
      %p139 = scmp.lt.s32.totalorder %s12, 3
      %p140 = pnand %p138, %p139
      %p141 = pneg %p140
      // Predicated region
      $region29: #{transformer_forward.5} parent=5 // pred_check
        _
      $region30: #{transformer_forward.5} parent=5 // pred_check_branch
        %143 = sbr.rel (%p140) target = $region32
      $region31: #{transformer_forward.5} parent=5 // pred_region
        %s144 = ssub.s32 %s12, 1
        %p145 = scmp.lt.s32.totalorder %s17, 1
        %s146 = scalar_select %p145, %s17, 1
        %s147 = smul.addr %s146, 8
        %s148 = scalar_lea.vmem %s0, %s147
        %p149 = pneg %p38
        %p150 = pneg %p35
        %p151 = pneg %p59
        %p152 = pneg %p56
        %p153 = pneg %p80
        %p154 = pneg %p77
        %p155 = pneg %p106
        %p156 = pneg %p103
        %s157 = sand.u32 %s93, 1
        %s158 = scalar_lea.sflag [#allocation3], %s157
        %s159 = sand.u32 %s93, 1
        %s160 = smul.addr %s159, 8
        %s161 = scalar_lea.vmem [#allocation2], %s160
        %p162 = scmp.lt.s32.totalorder %s17, 1
        %s163 = scalar_select %p162, %s17, 1
        %s164 = smul.addr %s163, 8
        %s165 = scalar_lea.vmem %s0, %s164
        %v167 = vld [vmem:[%s165] sm:$0xff]
        %v168 = vmul.f32 %v167, %v167
        %vm169 = vcmask 261120
        %v170 = vsel %vm169, %v168, 0.0
        %171 = vadd.xlane.f32.xlu0 %v170
        %v172 = vpop.xlane.xlu0 %171
        %v173 = vrcp.pop 32.0
        %v174 = vmul.f32 32.0, %v173
        %v175 = vsub.f32 1.0, %v174
        %v176 = vmul.f32 %v173, %v175
        %v177 = vadd.f32 %v173, %v176
        %vm178 = vweird.f32 %v173
        %v179 = vsel %vm178, %v173, %v177
        %v180 = vmul.f32 %v172, %v179
        %v181 = vadd.f32 %v180, 1e-05
        %v182 = vrsqrt.pop %v181
        %v183 = vmul.f32 %v182, %v181
        %v184 = vmul.f32 %v183, %v182
        %v185 = vmul.f32 0.5, %v184
        %v186 = vsub.f32 1.5, %v185
        %v187 = vmul.f32 %v182, %v186
        %vm188 = vweird.f32 %v181
        %vm189 = vweird.f32 %v182
        %vm190 = vmor %vm188, %vm189
        %v191 = vsel %vm190, %v182, %v187
        %v192 = vmul.f32 %v167, %v191
        %v193 = vld [vmem:[%s1] sm:$0x1]
        %v195 = vperm.slane %v193, 0
        %v197 = vmul.f32 %v192, %v195
        %v198 = vpack.c.bf16 %v197, %v197
        %v199 = vld [vmem:[%s2] sm:$0xf]
        %v200 = vld [vmem:[%s2 + $0x4] sm:$0xf]
        %v201 = vld [vmem:[%s2 + $0x8] sm:$0xf]
        %v202 = vld [vmem:[%s2 + $0xc] sm:$0xf]
        %v207 = vunpack.c.l.b16 %v199
        %v208 = vunpack.c.l.b16 %v200
        %v209 = vunpack.c.l.b16 %v201
        %v210 = vunpack.c.l.b16 %v202
        %v211 = vpack.c.b16 %v208, %v207
        %v212 = vpack.c.b16 %v210, %v209
        %v216 = vsel %vm169, %v198, 0
        %218 = vmatpush.bf16.msra.mxu0 0
        %219 = vmatpush.bf16.msra.mxu0 0
        %220 = vmatpush.bf16.msra.mxu0 0
        %221 = vmatpush.bf16.msra.mxu0 0
        %222 = vmatpush.bf16.msra.mxu0 0
        %223 = vmatpush.bf16.msra.mxu0 0
        %224 = vmatpush.bf16.msra.mxu0 %v212
        %225 = vmatpush.bf16.msra.mxu0 %v211
        %226 = vmatmul.bf16.gmra.mxu0 %v216
        %v227 = vpop.f32.mrf.mxu0
        %v228 = vadd.f32 0.0, %v227
        %v229 = vpop.f32.mrf.mxu0
        %230 = vdwg.mxu0
        %vm231 = vcmask 523264
        %232 = vst.msk [vmem:[%s161] sm:$0xff] %vm231, %v228
        %s233 = sand.u32 %s93, 1
        %s234 = scalar_lea.sflag [#allocation3], %s233
        %s235 = sand.u32 %s93, 1
        %s236 = smul.addr %s235, 8
        %s237 = scalar_lea.vmem [#allocation2], %s236
        // Predicated region
        $region33: #{transformer_forward.5} parent=31 // pred_check
          %p238 = pneg %p103
        $region34: #{transformer_forward.5} parent=31 // pred_check_branch
          %240 = sbr.rel (%p238) target = $region36
        $region35: #{transformer_forward.5} parent=31 // pred_region
          %242 = vsyncadd %s234, 0
          %s243 = smul.addr %s17, 8
          %s244 = scalar_lea.hbm %s3, %s243
          %s246 = sshll.u32 %s237, 4
          %s247 = int_to_ptr.vmem [resolvable:$true] %s246
          %s248 = sshll.u32 %s244, 4
          %s249 = int_to_ptr.hbm [resolvable:$true] %s248
          %251 = dma.vmem_to_hbm [thread:$0]  %s247, 128, %s249, %s234
        $region36: #{transformer_forward.5} parent=31 // pred_fallthru
          _
      $region32: #{transformer_forward.5} parent=5 // pred_fallthru
        _
      %p252 = scmp.le.s32.totalorder 2, %s12
      // Predicated region
      $region37: #{transformer_forward.5} parent=5 // pred_check
        %p253 = pneg %p252
      $region38: #{transformer_forward.5} parent=5 // pred_check_branch
        %255 = sbr.rel (%p253) target = $region40
      $region39: #{transformer_forward.5} parent=5 // pred_region
        %s256 = ssub.s32 %s12, 2
        // Predicated region
        $region41: #{transformer_forward.5} parent=39 // pred_check
          %p257 = pneg %p109
        $region42: #{transformer_forward.5} parent=39 // pred_check_branch
          %259 = sbr.rel (%p257) target = $region44
        $region43: #{transformer_forward.5} parent=39 // pred_region
          %s260 = sand.u32 %s94, 1
          %s261 = scalar_lea.sflag [#allocation3], %s260
          %s262 = sand.u32 %s94, 1
          %s263 = smul.addr %s262, 8
          %s264 = scalar_lea.vmem [#allocation2], %s263
          %266 = dma.done %s261, 128
        $region44: #{transformer_forward.5} parent=39 // pred_fallthru
          _
      $region40: #{transformer_forward.5} parent=5 // pred_fallthru
        _
    $region6: #{transformer_forward.5} parent=1 // loop_footer
      %s16 = sadd.s32 1, %s12
    $region7: #{transformer_forward.5} parent=1 // loop_footer_branch
      %11 = sbr.rel target = $region3
    $region8: #{transformer_forward.5} parent=1 // loop_exit
      _
    %267 = vsyncpa [#allocation3], 1
    %s268 = scalar_lea.sflag [#allocation3], 1
    %269 = vsyncpa %s268, 1

// kernel: transformer_forward.3
$region0: #{transformer_forward.3}
  #allocation0 [shape = 'u32[]', space=smem, size = 0x4, offset = 0x4, fixed_abs, tag = 'smem constant byte address 0x4 - core index']
  #allocation1 [shape = 'u32[72,128]{1,0:T(1,128)}', space=vmem, size = 0x9000, scoped, tag = 'internal scratch']
  #allocation2 [shape = 's32[1]{0}', space=sflag, size = 0x4, scoped, tag = 'scoped memory for transformer_forward.3']
  #allocation3 [shape = 'u8[512]{0}', space=smem, size = 0x200, scoped, tag = 'prefetched SMEM operand 0']
  %s0 = inlined_call_operand.vmem [shape: s32[16], index: 0, kind: input, shape index: {}]
  %s1 = inlined_call_operand.vmem [shape: f32[64,32], index: 1, kind: input, shape index: {}]
  %s2 = inlined_call_operand.vmem [shape: f32[16,32], index: 2, kind: output, shape index: {}]
  %s3 = sld [smem:[#allocation0]]
  $region37: #{transformer_forward.3} parent=0
    _
  %s5 = ssub.s32 1, %s3
  %s6 = scalar_select 0, %s5, %s3
  %s8 = sshll.u32 %s0, 4
  %s9 = int_to_ptr.vmem [resolvable:$true] %s8
  %11 = dma.vmem_to_smem %s9, 16, [#allocation3], [#allocation2]
  %13 = dma.done [#allocation2], 16
  %14 = sfence
  loop: start=0, step=1, limit=4
  $region2: #{transformer_forward.3} parent=0 // loop_pre_header
    _
  $region3: #{transformer_forward.3} parent=0 // loop_header
    %s16 = sphi 0, %s20
    %p17 = scmp.ge.s32.totalorder %s16, 4
    %s24 = sphi 0, %s24
    %s26 = sphi 0, %s24
    %s27 = sphi 0, %s26
    %s41 = sphi 0, %s27
    %s47 = sphi 0, %s49
    %s50 = sphi 0, %s47
    %s51 = sphi 0, %s50
    %s67 = sphi 0, %s51
  $region4: #{transformer_forward.3} parent=0 // loop_header_branch
    %19 = sbr.rel (%p17) target = $region8
  $region5: #{transformer_forward.3} parent=0 // loop_body
    %s21 = ssub.s32 %s16, 1
    %s22 = ssub.s32 %s16, 2
    %s23 = sadd.s32 %s16, 1
    %s25 = sadd.s32 %s24, 1
    %p28 = scmp.eq.s32.totalorder %s16, 1
    %p29 = scmp.ne.s32.totalorder %s24, %s26
    %p30 = scmp.eq.s32.totalorder %s16, 0
    %p31 = por %p29, %p30
    %p32 = scmp.ne.s32.totalorder %s24, %s26
    %p33 = scmp.eq.s32.totalorder %s21, 1
    %p34 = por %p32, %p33
    %p35 = scmp.ne.s32.totalorder %s26, %s27
    %p36 = scmp.eq.s32.totalorder %s21, 0
    %p37 = por %p35, %p36
    %p38 = scmp.ne.s32.totalorder %s26, %s27
    %p39 = scmp.eq.s32.totalorder %s22, 1
    %p40 = por %p38, %p39
    %p42 = scmp.ne.s32.totalorder %s27, %s41
    %p43 = scmp.eq.s32.totalorder %s22, 0
    %p44 = por %p42, %p43
    %s45 = ssub.s32 %s16, %s23
    %p46 = scmp.eq.s32.totalorder %s45, 0
    %s48 = sadd.s32 %s47, 1
    %s49 = scalar_select %p46, %s47, %s48
    %p52 = pneg %p46
    %p53 = scmp.eq.s32.totalorder %s16, 1
    %p54 = por %p52, %p53
    %p55 = scmp.ne.s32.totalorder %s47, %s50
    %p56 = scmp.eq.s32.totalorder %s16, 0
    %p57 = por %p55, %p56
    %p58 = scmp.ne.s32.totalorder %s47, %s50
    %p59 = scmp.eq.s32.totalorder %s21, 1
    %p60 = por %p58, %p59
    %p61 = scmp.ne.s32.totalorder %s50, %s51
    %p62 = scmp.eq.s32.totalorder %s21, 0
    %p63 = por %p61, %p62
    %p64 = scmp.ne.s32.totalorder %s50, %s51
    %p65 = scmp.eq.s32.totalorder %s22, 1
    %p66 = por %p64, %p65
    %p68 = scmp.ne.s32.totalorder %s51, %s67
    %p69 = scmp.eq.s32.totalorder %s22, 0
    %p70 = por %p68, %p69
    %p71 = scmp.le.s32.totalorder 1, %s16
    %p72 = scmp.lt.s32.totalorder %s16, 3
    %p73 = pnand %p71, %p72
    %p74 = pneg %p73
    // Predicated region
    $region9: #{transformer_forward.3} parent=5 // pred_check
      _
    $region10: #{transformer_forward.3} parent=5 // pred_check_branch
      %76 = sbr.rel (%p73) target = $region12
    $region11: #{transformer_forward.3} parent=5 // pred_region
      %s77 = ssub.s32 %s16, 1
      // Predicated region
      $region13: #{transformer_forward.3} parent=11 // pred_check
        %p78 = pneg %p37
      $region14: #{transformer_forward.3} parent=11 // pred_check_branch
        %80 = sbr.rel (%p78) target = $region16
      $region15: #{transformer_forward.3} parent=11 // pred_region
        _
      $region16: #{transformer_forward.3} parent=11 // pred_fallthru
        _
    $region12: #{transformer_forward.3} parent=5 // pred_fallthru
      _
    %p81 = scmp.lt.s32.totalorder %s16, 2
    // Predicated region
    $region17: #{transformer_forward.3} parent=5 // pred_check
      %p82 = pneg %p81
    $region18: #{transformer_forward.3} parent=5 // pred_check_branch
      %84 = sbr.rel (%p82) target = $region20
    $region19: #{transformer_forward.3} parent=5 // pred_region
      _
    $region20: #{transformer_forward.3} parent=5 // pred_fallthru
      _
    %p85 = scmp.le.s32.totalorder 1, %s16
    %p86 = scmp.lt.s32.totalorder %s16, 3
    %p87 = pnand %p85, %p86
    %p88 = pneg %p87
    // Predicated region
    $region21: #{transformer_forward.3} parent=5 // pred_check
      _
    $region22: #{transformer_forward.3} parent=5 // pred_check_branch
      %90 = sbr.rel (%p87) target = $region24
    $region23: #{transformer_forward.3} parent=5 // pred_region
      %s91 = ssub.s32 %s16, 1
      %p92 = pneg %p37
      %p93 = pneg %p34
      %p94 = pneg %p63
      %p95 = pneg %p60
      %p96 = scmp.lt.s32.totalorder %s21, 1
      %s97 = scalar_select %p96, %s21, 1
      %s98 = smul.addr %s97, 8
      %s99 = scalar_lea.vmem %s2, %s98
      %p100 = scmp.lt.s32.totalorder %s21, 1
      %s101 = scalar_select %p100, %s21, 1
      %s102 = smul.addr %s101, 8
      %s103 = scalar_lea.vmem %s2, %s102
      %s104 = smul.u32 %s21, 8
      %s105 = sld [smem:[#allocation3 + %s104]]
      %s106 = scalar_lea.vmem %s1, %s105
      %v107 = vld [vmem:[%s106] sm:$0x1]
      %vm108 = vcmask 253952
      %109 = vst.msk [vmem:[%s103] sm:$0x1] %vm108, %v107
      %s110 = sadd.s32 %s104, 1
      %s111 = sld [smem:[#allocation3 + %s110]]
      %s112 = scalar_lea.vmem %s1, %s111
      %v113 = vld [vmem:[%s112] sm:$0x1]
      %114 = vst.msk [vmem:[%s103 + $0x1] sm:$0x1] %vm108, %v113
      %s115 = sadd.s32 %s104, 2
      %s116 = sld [smem:[#allocation3 + %s115]]
      %s117 = scalar_lea.vmem %s1, %s116
      %v118 = vld [vmem:[%s117] sm:$0x1]
      %119 = vst.msk [vmem:[%s103 + $0x2] sm:$0x1] %vm108, %v118
      %s120 = sadd.s32 %s104, 3
      %s121 = sld [smem:[#allocation3 + %s120]]
      %s122 = scalar_lea.vmem %s1, %s121
      %v123 = vld [vmem:[%s122] sm:$0x1]
      %124 = vst.msk [vmem:[%s103 + $0x3] sm:$0x1] %vm108, %v123
      %s125 = sadd.s32 %s104, 4
      %s126 = sld [smem:[#allocation3 + %s125]]
      %s127 = scalar_lea.vmem %s1, %s126
      %v128 = vld [vmem:[%s127] sm:$0x1]
      %129 = vst.msk [vmem:[%s103 + $0x4] sm:$0x1] %vm108, %v128
      %s130 = sadd.s32 %s104, 5
      %s131 = sld [smem:[#allocation3 + %s130]]
      %s132 = scalar_lea.vmem %s1, %s131
      %v133 = vld [vmem:[%s132] sm:$0x1]
      %134 = vst.msk [vmem:[%s103 + $0x5] sm:$0x1] %vm108, %v133
      %s135 = sadd.s32 %s104, 6
      %s136 = sld [smem:[#allocation3 + %s135]]
      %s137 = scalar_lea.vmem %s1, %s136
      %v138 = vld [vmem:[%s137] sm:$0x1]
      %139 = vst.msk [vmem:[%s103 + $0x6] sm:$0x1] %vm108, %v138
      %s140 = sadd.s32 %s104, 7
      %s141 = sld [smem:[#allocation3 + %s140]]
      %s142 = scalar_lea.vmem %s1, %s141
      %v143 = vld [vmem:[%s142] sm:$0x1]
      %144 = vst.msk [vmem:[%s103 + $0x7] sm:$0x1] %vm108, %v143
      %p145 = scmp.lt.s32.totalorder %s21, 1
      %s146 = scalar_select %p145, %s21, 1
      %s147 = smul.addr %s146, 8
      %s148 = scalar_lea.vmem %s2, %s147
      // Predicated region
      $region25: #{transformer_forward.3} parent=23 // pred_check
        %p149 = pneg %p60
      $region26: #{transformer_forward.3} parent=23 // pred_check_branch
        %151 = sbr.rel (%p149) target = $region28
      $region27: #{transformer_forward.3} parent=23 // pred_region
        _
      $region28: #{transformer_forward.3} parent=23 // pred_fallthru
        _
    $region24: #{transformer_forward.3} parent=5 // pred_fallthru
      _
    %p152 = scmp.le.s32.totalorder 2, %s16
    // Predicated region
    $region29: #{transformer_forward.3} parent=5 // pred_check
      %p153 = pneg %p152
    $region30: #{transformer_forward.3} parent=5 // pred_check_branch
      %155 = sbr.rel (%p153) target = $region32
    $region31: #{transformer_forward.3} parent=5 // pred_region
      %s156 = ssub.s32 %s16, 2
      // Predicated region
      $region33: #{transformer_forward.3} parent=31 // pred_check
        %p157 = pneg %p66
      $region34: #{transformer_forward.3} parent=31 // pred_check_branch
        %159 = sbr.rel (%p157) target = $region36
      $region35: #{transformer_forward.3} parent=31 // pred_region
        %p160 = scmp.lt.s32.totalorder %s22, 1
        %s161 = scalar_select %p160, %s22, 1
        %s162 = smul.addr %s161, 8
        %s163 = scalar_lea.vmem %s2, %s162
      $region36: #{transformer_forward.3} parent=31 // pred_fallthru
        _
    $region32: #{transformer_forward.3} parent=5 // pred_fallthru
      _
  $region6: #{transformer_forward.3} parent=0 // loop_footer
    %s20 = sadd.s32 1, %s16
  $region7: #{transformer_forward.3} parent=0 // loop_footer_branch
    %15 = sbr.rel target = $region3
  $region8: #{transformer_forward.3} parent=0 // loop_exit
    _

// kernel: transformer_forward.4
$region0: #{transformer_forward.4}
  #allocation0 [shape = 'u32[]', space=smem, size = 0x4, offset = 0x4, fixed_abs, tag = 'smem constant byte address 0x4 - core index']
  #allocation1 [shape = 'u32[72,128]{1,0:T(1,128)}', space=vmem, size = 0x9000, scoped, tag = 'internal scratch']
  %s0 = inlined_call_operand.vmem [shape: f32[2,8,32], index: 0, kind: input, shape index: {}]
  %s1 = inlined_call_operand.vmem [shape: bf16[2,32,64], index: 1, kind: input, shape index: {}]
  %s2 = inlined_call_operand.vmem [shape: bf16[2,32,32], index: 2, kind: input, shape index: {}]
  %s3 = inlined_call_operand.vmem [shape: bf16[2,32,128], index: 3, kind: input, shape index: {}]
  %s4 = inlined_call_operand.vmem [shape: bf16[2,64,32], index: 4, kind: input, shape index: {}]
  %s5 = inlined_call_operand.vmem [shape: f32[2,1,32], index: 5, kind: input, shape index: {}]
  %s6 = inlined_call_operand.vmem [shape: f32[2,1,32], index: 6, kind: input, shape index: {}]
  %s7 = inlined_call_operand.vmem [shape: f32[8,24], index: 7, kind: input, shape index: {}]
  %s8 = inlined_call_operand.vmem [shape: f32[8,24], index: 8, kind: input, shape index: {}]
  %s9 = inlined_call_operand.vmem [shape: f32[2,8,32], index: 9, kind: output, shape index: {}]
  %s10 = sld [smem:[#allocation0]]
  $region73: #{transformer_forward.4} parent=0
    _
  %s12 = ssub.s32 1, %s10
  %s13 = scalar_select 0, %s12, %s10
  loop: start=0, step=1, limit=6
  $region2: #{transformer_forward.4} parent=0 // loop_pre_header
    _
  $region3: #{transformer_forward.4} parent=0 // loop_header
    %s15 = sphi 0, %s19
    %p16 = scmp.ge.s32.totalorder %s15, 6
    %s22 = sphi 0, %s34
    %s23 = sphi 0, %s30
    %s24 = sphi 0, %s22
    %s25 = sphi 0, %s23
    %s26 = sphi 0, %s24
    %s27 = sphi 0, %s25
    %s37 = sphi 0, %s39
    %s40 = sphi 0, %s37
    %s41 = sphi 0, %s40
    %s57 = sphi 0, %s41
    %s63 = sphi 0, %s65
    %s66 = sphi 0, %s63
    %s67 = sphi 0, %s66
    %s83 = sphi 0, %s67
    %s89 = sphi 0, %s91
    %s92 = sphi 0, %s89
    %s93 = sphi 0, %s92
    %s109 = sphi 0, %s93
    %s115 = sphi 0, %s117
    %s118 = sphi 0, %s115
    %s119 = sphi 0, %s118
    %s135 = sphi 0, %s119
    %s141 = sphi 0, %s143
    %s144 = sphi 0, %s141
    %s145 = sphi 0, %s144
    %s161 = sphi 0, %s145
    %s167 = sphi 0, %s169
    %s170 = sphi 0, %s167
    %s171 = sphi 0, %s170
    %s187 = sphi 0, %s171
    %s193 = sphi 0, %s195
    %s196 = sphi 0, %s193
    %s197 = sphi 0, %s196
    %s213 = sphi 0, %s197
    %s217 = sphi 0, %s217
    %s219 = sphi 0, %s217
    %s220 = sphi 0, %s219
    %s234 = sphi 0, %s220
    %s238 = sphi 0, %s238
    %s240 = sphi 0, %s238
    %s241 = sphi 0, %s240
    %s255 = sphi 0, %s241
    %s261 = sphi 0, %s263
    %s264 = sphi 0, %s261
    %s265 = sphi 0, %s264
    %s281 = sphi 0, %s265
  $region4: #{transformer_forward.4} parent=0 // loop_header_branch
    %18 = sbr.rel (%p16) target = $region8
  $region5: #{transformer_forward.4} parent=0 // loop_body
    %s20 = ssub.s32 %s15, 1
    %s21 = ssub.s32 %s15, 2
    %s28 = sadd.s32 1, %s23
    %p29 = scmp.ge.s32.totalorder %s28, 2
    %s30 = scalar_select %p29, 0, %s28
    %s31 = sadd.s32 1, %s22
    %s32 = scalar_select %p29, %s31, %s22
    %p33 = scmp.ge.s32.totalorder %s32, 2
    %s34 = scalar_select %p33, 0, %s32
    %s35 = ssub.s32 %s22, %s34
    %p36 = scmp.eq.s32.totalorder %s35, 0
    %s38 = sadd.s32 %s37, 1
    %s39 = scalar_select %p36, %s37, %s38
    %p42 = pneg %p36
    %p43 = scmp.eq.s32.totalorder %s15, 3
    %p44 = por %p42, %p43
    %p45 = scmp.ne.s32.totalorder %s37, %s40
    %p46 = scmp.eq.s32.totalorder %s15, 0
    %p47 = por %p45, %p46
    %p48 = scmp.ne.s32.totalorder %s37, %s40
    %p49 = scmp.eq.s32.totalorder %s20, 3
    %p50 = por %p48, %p49
    %p51 = scmp.ne.s32.totalorder %s40, %s41
    %p52 = scmp.eq.s32.totalorder %s20, 0
    %p53 = por %p51, %p52
    %p54 = scmp.ne.s32.totalorder %s40, %s41
    %p55 = scmp.eq.s32.totalorder %s21, 3
    %p56 = por %p54, %p55
    %p58 = scmp.ne.s32.totalorder %s41, %s57
    %p59 = scmp.eq.s32.totalorder %s21, 0
    %p60 = por %p58, %p59
    %s61 = ssub.s32 %s23, %s30
    %p62 = scmp.eq.s32.totalorder %s61, 0
    %s64 = sadd.s32 %s63, 1
    %s65 = scalar_select %p62, %s63, %s64
    %p68 = pneg %p62
    %p69 = scmp.eq.s32.totalorder %s15, 3
    %p70 = por %p68, %p69
    %p71 = scmp.ne.s32.totalorder %s63, %s66
    %p72 = scmp.eq.s32.totalorder %s15, 0
    %p73 = por %p71, %p72
    %p74 = scmp.ne.s32.totalorder %s63, %s66
    %p75 = scmp.eq.s32.totalorder %s20, 3
    %p76 = por %p74, %p75
    %p77 = scmp.ne.s32.totalorder %s66, %s67
    %p78 = scmp.eq.s32.totalorder %s20, 0
    %p79 = por %p77, %p78
    %p80 = scmp.ne.s32.totalorder %s66, %s67
    %p81 = scmp.eq.s32.totalorder %s21, 3
    %p82 = por %p80, %p81
    %p84 = scmp.ne.s32.totalorder %s67, %s83
    %p85 = scmp.eq.s32.totalorder %s21, 0
    %p86 = por %p84, %p85
    %s87 = ssub.s32 %s23, %s30
    %p88 = scmp.eq.s32.totalorder %s87, 0
    %s90 = sadd.s32 %s89, 1
    %s91 = scalar_select %p88, %s89, %s90
    %p94 = pneg %p88
    %p95 = scmp.eq.s32.totalorder %s15, 3
    %p96 = por %p94, %p95
    %p97 = scmp.ne.s32.totalorder %s89, %s92
    %p98 = scmp.eq.s32.totalorder %s15, 0
    %p99 = por %p97, %p98
    %p100 = scmp.ne.s32.totalorder %s89, %s92
    %p101 = scmp.eq.s32.totalorder %s20, 3
    %p102 = por %p100, %p101
    %p103 = scmp.ne.s32.totalorder %s92, %s93
    %p104 = scmp.eq.s32.totalorder %s20, 0
    %p105 = por %p103, %p104
    %p106 = scmp.ne.s32.totalorder %s92, %s93
    %p107 = scmp.eq.s32.totalorder %s21, 3
    %p108 = por %p106, %p107
    %p110 = scmp.ne.s32.totalorder %s93, %s109
    %p111 = scmp.eq.s32.totalorder %s21, 0
    %p112 = por %p110, %p111
    %s113 = ssub.s32 %s23, %s30
    %p114 = scmp.eq.s32.totalorder %s113, 0
    %s116 = sadd.s32 %s115, 1
    %s117 = scalar_select %p114, %s115, %s116
    %p120 = pneg %p114
    %p121 = scmp.eq.s32.totalorder %s15, 3
    %p122 = por %p120, %p121
    %p123 = scmp.ne.s32.totalorder %s115, %s118
    %p124 = scmp.eq.s32.totalorder %s15, 0
    %p125 = por %p123, %p124
    %p126 = scmp.ne.s32.totalorder %s115, %s118
    %p127 = scmp.eq.s32.totalorder %s20, 3
    %p128 = por %p126, %p127
    %p129 = scmp.ne.s32.totalorder %s118, %s119
    %p130 = scmp.eq.s32.totalorder %s20, 0
    %p131 = por %p129, %p130
    %p132 = scmp.ne.s32.totalorder %s118, %s119
    %p133 = scmp.eq.s32.totalorder %s21, 3
    %p134 = por %p132, %p133
    %p136 = scmp.ne.s32.totalorder %s119, %s135
    %p137 = scmp.eq.s32.totalorder %s21, 0
    %p138 = por %p136, %p137
    %s139 = ssub.s32 %s23, %s30
    %p140 = scmp.eq.s32.totalorder %s139, 0
    %s142 = sadd.s32 %s141, 1
    %s143 = scalar_select %p140, %s141, %s142
    %p146 = pneg %p140
    %p147 = scmp.eq.s32.totalorder %s15, 3
    %p148 = por %p146, %p147
    %p149 = scmp.ne.s32.totalorder %s141, %s144
    %p150 = scmp.eq.s32.totalorder %s15, 0
    %p151 = por %p149, %p150
    %p152 = scmp.ne.s32.totalorder %s141, %s144
    %p153 = scmp.eq.s32.totalorder %s20, 3
    %p154 = por %p152, %p153
    %p155 = scmp.ne.s32.totalorder %s144, %s145
    %p156 = scmp.eq.s32.totalorder %s20, 0
    %p157 = por %p155, %p156
    %p158 = scmp.ne.s32.totalorder %s144, %s145
    %p159 = scmp.eq.s32.totalorder %s21, 3
    %p160 = por %p158, %p159
    %p162 = scmp.ne.s32.totalorder %s145, %s161
    %p163 = scmp.eq.s32.totalorder %s21, 0
    %p164 = por %p162, %p163
    %s165 = ssub.s32 %s23, %s30
    %p166 = scmp.eq.s32.totalorder %s165, 0
    %s168 = sadd.s32 %s167, 1
    %s169 = scalar_select %p166, %s167, %s168
    %p172 = pneg %p166
    %p173 = scmp.eq.s32.totalorder %s15, 3
    %p174 = por %p172, %p173
    %p175 = scmp.ne.s32.totalorder %s167, %s170
    %p176 = scmp.eq.s32.totalorder %s15, 0
    %p177 = por %p175, %p176
    %p178 = scmp.ne.s32.totalorder %s167, %s170
    %p179 = scmp.eq.s32.totalorder %s20, 3
    %p180 = por %p178, %p179
    %p181 = scmp.ne.s32.totalorder %s170, %s171
    %p182 = scmp.eq.s32.totalorder %s20, 0
    %p183 = por %p181, %p182
    %p184 = scmp.ne.s32.totalorder %s170, %s171
    %p185 = scmp.eq.s32.totalorder %s21, 3
    %p186 = por %p184, %p185
    %p188 = scmp.ne.s32.totalorder %s171, %s187
    %p189 = scmp.eq.s32.totalorder %s21, 0
    %p190 = por %p188, %p189
    %s191 = ssub.s32 %s23, %s30
    %p192 = scmp.eq.s32.totalorder %s191, 0
    %s194 = sadd.s32 %s193, 1
    %s195 = scalar_select %p192, %s193, %s194
    %p198 = pneg %p192
    %p199 = scmp.eq.s32.totalorder %s15, 3
    %p200 = por %p198, %p199
    %p201 = scmp.ne.s32.totalorder %s193, %s196
    %p202 = scmp.eq.s32.totalorder %s15, 0
    %p203 = por %p201, %p202
    %p204 = scmp.ne.s32.totalorder %s193, %s196
    %p205 = scmp.eq.s32.totalorder %s20, 3
    %p206 = por %p204, %p205
    %p207 = scmp.ne.s32.totalorder %s196, %s197
    %p208 = scmp.eq.s32.totalorder %s20, 0
    %p209 = por %p207, %p208
    %p210 = scmp.ne.s32.totalorder %s196, %s197
    %p211 = scmp.eq.s32.totalorder %s21, 3
    %p212 = por %p210, %p211
    %p214 = scmp.ne.s32.totalorder %s197, %s213
    %p215 = scmp.eq.s32.totalorder %s21, 0
    %p216 = por %p214, %p215
    %s218 = sadd.s32 %s217, 1
    %p221 = scmp.eq.s32.totalorder %s15, 3
    %p222 = scmp.ne.s32.totalorder %s217, %s219
    %p223 = scmp.eq.s32.totalorder %s15, 0
    %p224 = por %p222, %p223
    %p225 = scmp.ne.s32.totalorder %s217, %s219
    %p226 = scmp.eq.s32.totalorder %s20, 3
    %p227 = por %p225, %p226
    %p228 = scmp.ne.s32.totalorder %s219, %s220
    %p229 = scmp.eq.s32.totalorder %s20, 0
    %p230 = por %p228, %p229
    %p231 = scmp.ne.s32.totalorder %s219, %s220
    %p232 = scmp.eq.s32.totalorder %s21, 3
    %p233 = por %p231, %p232
    %p235 = scmp.ne.s32.totalorder %s220, %s234
    %p236 = scmp.eq.s32.totalorder %s21, 0
    %p237 = por %p235, %p236
    %s239 = sadd.s32 %s238, 1
    %p242 = scmp.eq.s32.totalorder %s15, 3
    %p243 = scmp.ne.s32.totalorder %s238, %s240
    %p244 = scmp.eq.s32.totalorder %s15, 0
    %p245 = por %p243, %p244
    %p246 = scmp.ne.s32.totalorder %s238, %s240
    %p247 = scmp.eq.s32.totalorder %s20, 3
    %p248 = por %p246, %p247
    %p249 = scmp.ne.s32.totalorder %s240, %s241
    %p250 = scmp.eq.s32.totalorder %s20, 0
    %p251 = por %p249, %p250
    %p252 = scmp.ne.s32.totalorder %s240, %s241
    %p253 = scmp.eq.s32.totalorder %s21, 3
    %p254 = por %p252, %p253
    %p256 = scmp.ne.s32.totalorder %s241, %s255
    %p257 = scmp.eq.s32.totalorder %s21, 0
    %p258 = por %p256, %p257
    %s259 = ssub.s32 %s22, %s34
    %p260 = scmp.eq.s32.totalorder %s259, 0
    %s262 = sadd.s32 %s261, 1
    %s263 = scalar_select %p260, %s261, %s262
    %p266 = pneg %p260
    %p267 = scmp.eq.s32.totalorder %s15, 3
    %p268 = por %p266, %p267
    %p269 = scmp.ne.s32.totalorder %s261, %s264
    %p270 = scmp.eq.s32.totalorder %s15, 0
    %p271 = por %p269, %p270
    %p272 = scmp.ne.s32.totalorder %s261, %s264
    %p273 = scmp.eq.s32.totalorder %s20, 3
    %p274 = por %p272, %p273
    %p275 = scmp.ne.s32.totalorder %s264, %s265
    %p276 = scmp.eq.s32.totalorder %s20, 0
    %p277 = por %p275, %p276
    %p278 = scmp.ne.s32.totalorder %s264, %s265
    %p279 = scmp.eq.s32.totalorder %s21, 3
    %p280 = por %p278, %p279
    %p282 = scmp.ne.s32.totalorder %s265, %s281
    %p283 = scmp.eq.s32.totalorder %s21, 0
    %p284 = por %p282, %p283
    %p285 = scmp.le.s32.totalorder 1, %s15
    %p286 = scmp.lt.s32.totalorder %s15, 5
    %p287 = pnand %p285, %p286
    %p288 = pneg %p287
    // Predicated region
    $region9: #{transformer_forward.4} parent=5 // pred_check
      _
    $region10: #{transformer_forward.4} parent=5 // pred_check_branch
      %290 = sbr.rel (%p287) target = $region12
    $region11: #{transformer_forward.4} parent=5 // pred_region
      %s291 = ssub.s32 %s15, 1
      // Predicated region
      $region13: #{transformer_forward.4} parent=11 // pred_check
        %p292 = pneg %p230
      $region14: #{transformer_forward.4} parent=11 // pred_check_branch
        %294 = sbr.rel (%p292) target = $region16
      $region15: #{transformer_forward.4} parent=11 // pred_region
        _
      $region16: #{transformer_forward.4} parent=11 // pred_fallthru
        _
      // Predicated region
      $region17: #{transformer_forward.4} parent=11 // pred_check
        %p295 = pneg %p251
      $region18: #{transformer_forward.4} parent=11 // pred_check_branch
        %297 = sbr.rel (%p295) target = $region20
      $region19: #{transformer_forward.4} parent=11 // pred_region
        _
      $region20: #{transformer_forward.4} parent=11 // pred_fallthru
        _
    $region12: #{transformer_forward.4} parent=5 // pred_fallthru
      _
    %p298 = scmp.lt.s32.totalorder %s15, 4
    // Predicated region
    $region21: #{transformer_forward.4} parent=5 // pred_check
      %p299 = pneg %p298
    $region22: #{transformer_forward.4} parent=5 // pred_check_branch
      %301 = sbr.rel (%p299) target = $region24
    $region23: #{transformer_forward.4} parent=5 // pred_region
      // Predicated region
      $region25: #{transformer_forward.4} parent=23 // pred_check
        %p302 = pneg %p47
      $region26: #{transformer_forward.4} parent=23 // pred_check_branch
        %304 = sbr.rel (%p302) target = $region28
      $region27: #{transformer_forward.4} parent=23 // pred_region
        %p305 = scmp.lt.s32.totalorder %s22, 1
        %s306 = scalar_select %p305, %s22, 1
        %s307 = smul.addr %s306, 8
        %s308 = scalar_lea.vmem %s0, %s307
      $region28: #{transformer_forward.4} parent=23 // pred_fallthru
        _
      // Predicated region
      $region29: #{transformer_forward.4} parent=23 // pred_check
        %p309 = pneg %p73
      $region30: #{transformer_forward.4} parent=23 // pred_check_branch
        %311 = sbr.rel (%p309) target = $region32
      $region31: #{transformer_forward.4} parent=23 // pred_region
        %p312 = scmp.lt.s32.totalorder %s23, 1
        %s313 = scalar_select %p312, %s23, 1
        %s314 = smul.addr %s313, 4
        %s315 = smul.addr %s314, 4
        %s316 = scalar_lea.vmem %s1, %s315
      $region32: #{transformer_forward.4} parent=23 // pred_fallthru
        _
      // Predicated region
      $region33: #{transformer_forward.4} parent=23 // pred_check
        %p317 = pneg %p99
      $region34: #{transformer_forward.4} parent=23 // pred_check_branch
        %319 = sbr.rel (%p317) target = $region36
      $region35: #{transformer_forward.4} parent=23 // pred_region
        %p320 = scmp.lt.s32.totalorder %s23, 1
        %s321 = scalar_select %p320, %s23, 1
        %s322 = smul.addr %s321, 4
        %s323 = smul.addr %s322, 4
        %s324 = scalar_lea.vmem %s2, %s323
      $region36: #{transformer_forward.4} parent=23 // pred_fallthru
        _
      // Predicated region
      $region37: #{transformer_forward.4} parent=23 // pred_check
        %p325 = pneg %p125
      $region38: #{transformer_forward.4} parent=23 // pred_check_branch
        %327 = sbr.rel (%p325) target = $region40
      $region39: #{transformer_forward.4} parent=23 // pred_region
        %p328 = scmp.lt.s32.totalorder %s23, 1
        %s329 = scalar_select %p328, %s23, 1
        %s330 = smul.addr %s329, 4
        %s331 = smul.addr %s330, 4
        %s332 = scalar_lea.vmem %s3, %s331
      $region40: #{transformer_forward.4} parent=23 // pred_fallthru
        _
      // Predicated region
      $region41: #{transformer_forward.4} parent=23 // pred_check
        %p333 = pneg %p151
      $region42: #{transformer_forward.4} parent=23 // pred_check_branch
        %335 = sbr.rel (%p333) target = $region44
      $region43: #{transformer_forward.4} parent=23 // pred_region
        %p336 = scmp.lt.s32.totalorder %s23, 1
        %s337 = scalar_select %p336, %s23, 1
        %s338 = smul.addr %s337, 8
        %s339 = smul.addr %s338, 4
        %s340 = scalar_lea.vmem %s4, %s339
      $region44: #{transformer_forward.4} parent=23 // pred_fallthru
        _
      // Predicated region
      $region45: #{transformer_forward.4} parent=23 // pred_check
        %p341 = pneg %p177
      $region46: #{transformer_forward.4} parent=23 // pred_check_branch
        %343 = sbr.rel (%p341) target = $region48
      $region47: #{transformer_forward.4} parent=23 // pred_region
        %p344 = scmp.lt.s32.totalorder %s23, 1
        %s345 = scalar_select %p344, %s23, 1
        %s346 = scalar_lea.vmem %s5, %s345
      $region48: #{transformer_forward.4} parent=23 // pred_fallthru
        _
      // Predicated region
      $region49: #{transformer_forward.4} parent=23 // pred_check
        %p347 = pneg %p203
      $region50: #{transformer_forward.4} parent=23 // pred_check_branch
        %349 = sbr.rel (%p347) target = $region52
      $region51: #{transformer_forward.4} parent=23 // pred_region
        %p350 = scmp.lt.s32.totalorder %s23, 1
        %s351 = scalar_select %p350, %s23, 1
        %s352 = scalar_lea.vmem %s6, %s351
      $region52: #{transformer_forward.4} parent=23 // pred_fallthru
        _
    $region24: #{transformer_forward.4} parent=5 // pred_fallthru
      _
    %p353 = scmp.le.s32.totalorder 1, %s15
    %p354 = scmp.lt.s32.totalorder %s15, 5
    %p355 = pnand %p353, %p354
    %p356 = pneg %p355
    // Predicated region
    $region53: #{transformer_forward.4} parent=5 // pred_check
      _
    $region54: #{transformer_forward.4} parent=5 // pred_check_branch
      %358 = sbr.rel (%p355) target = $region56
    $region55: #{transformer_forward.4} parent=5 // pred_region
      %s359 = ssub.s32 %s15, 1
      %p360 = scmp.lt.s32.totalorder %s24, 1
      %s361 = scalar_select %p360, %s24, 1
      %s362 = smul.addr %s361, 8
      %s363 = scalar_lea.vmem %s0, %s362
      %p364 = pneg %p53
      %p365 = pneg %p50
      %p366 = scmp.lt.s32.totalorder %s25, 1
      %s367 = scalar_select %p366, %s25, 1
      %s368 = smul.addr %s367, 4
      %s369 = smul.addr %s368, 4
      %s370 = scalar_lea.vmem %s1, %s369
      %p371 = pneg %p79
      %p372 = pneg %p76
      %p373 = scmp.lt.s32.totalorder %s25, 1
      %s374 = scalar_select %p373, %s25, 1
      %s375 = smul.addr %s374, 4
      %s376 = smul.addr %s375, 4
      %s377 = scalar_lea.vmem %s2, %s376
      %p378 = pneg %p105
      %p379 = pneg %p102
      %p380 = scmp.lt.s32.totalorder %s25, 1
      %s381 = scalar_select %p380, %s25, 1
      %s382 = smul.addr %s381, 4
      %s383 = smul.addr %s382, 4
      %s384 = scalar_lea.vmem %s3, %s383
      %p385 = pneg %p131
      %p386 = pneg %p128
      %p387 = scmp.lt.s32.totalorder %s25, 1
      %s388 = scalar_select %p387, %s25, 1
      %s389 = smul.addr %s388, 8
      %s390 = smul.addr %s389, 4
      %s391 = scalar_lea.vmem %s4, %s390
      %p392 = pneg %p157
      %p393 = pneg %p154
      %p394 = scmp.lt.s32.totalorder %s25, 1
      %s395 = scalar_select %p394, %s25, 1
      %s396 = scalar_lea.vmem %s5, %s395
      %p397 = pneg %p183
      %p398 = pneg %p180
      %p399 = scmp.lt.s32.totalorder %s25, 1
      %s400 = scalar_select %p399, %s25, 1
      %s401 = scalar_lea.vmem %s6, %s400
      %p402 = pneg %p209
      %p403 = pneg %p206
      %p404 = pneg %p230
      %p405 = pneg %p227
      %p406 = pneg %p251
      %p407 = pneg %p248
      %p408 = pneg %p277
      %p409 = pneg %p274
      %p410 = scmp.lt.s32.totalorder %s24, 1
      %s411 = scalar_select %p410, %s24, 1
      %s412 = smul.addr %s411, 8
      %s413 = scalar_lea.vmem %s9, %s412
      %p414 = scmp.lt.s32.totalorder %s24, 1
      %s415 = scalar_select %p414, %s24, 1
      %s416 = smul.addr %s415, 8
      %s417 = scalar_lea.vmem %s0, %s416
      %p418 = scmp.lt.s32.totalorder %s25, 1
      %s419 = scalar_select %p418, %s25, 1
      %s420 = smul.addr %s419, 4
      %s421 = smul.addr %s420, 4
      %s422 = scalar_lea.vmem %s1, %s421
      %p423 = scmp.lt.s32.totalorder %s25, 1
      %s424 = scalar_select %p423, %s25, 1
      %s425 = smul.addr %s424, 4
      %s426 = smul.addr %s425, 4
      %s427 = scalar_lea.vmem %s2, %s426
      %p428 = scmp.lt.s32.totalorder %s25, 1
      %s429 = scalar_select %p428, %s25, 1
      %s430 = smul.addr %s429, 4
      %s431 = smul.addr %s430, 4
      %s432 = scalar_lea.vmem %s3, %s431
      %p433 = scmp.lt.s32.totalorder %s25, 1
      %s434 = scalar_select %p433, %s25, 1
      %s435 = smul.addr %s434, 8
      %s436 = smul.addr %s435, 4
      %s437 = scalar_lea.vmem %s4, %s436
      %p438 = scmp.lt.s32.totalorder %s25, 1
      %s439 = scalar_select %p438, %s25, 1
      %s440 = scalar_lea.vmem %s5, %s439
      %p441 = scmp.lt.s32.totalorder %s25, 1
      %s442 = scalar_select %p441, %s25, 1
      %s443 = scalar_lea.vmem %s6, %s442
      %p444 = scmp.lt.s32.totalorder %s24, 1
      %s445 = scalar_select %p444, %s24, 1
      %s446 = smul.addr %s445, 8
      %s447 = scalar_lea.vmem %s9, %s446
      %p449 = scmp.eq.s32.totalorder %s25, 0
      // Predicated region
      $region57: #{transformer_forward.4} parent=55 // pred_check
        %p450 = pneg %p449
      $region58: #{transformer_forward.4} parent=55 // pred_check_branch
        %452 = sbr.rel (%p450) target = $region60
      $region59: #{transformer_forward.4} parent=55 // pred_region
        %v453 = vld [vmem:[%s417] sm:$0xff]
        %vm454 = vcmask 261120
        %455 = vst.msk [vmem:[%s447] sm:$0xff] %vm454, %v453
      $region60: #{transformer_forward.4} parent=55 // pred_fallthru
        _
      %v456 = vld [vmem:[%s447] sm:$0xff]
      %v457 = vmul.f32 %v456, %v456
      %vm458 = vcmask 261120
      %v459 = vsel %vm458, %v457, 0.0
      %460 = vadd.xlane.f32.xlu0 %v459
      %v461 = vpop.xlane.xlu0 %460
      %v462 = vrcp.pop 32.0
      %v463 = vmul.f32 32.0, %v462
      %v464 = vsub.f32 1.0, %v463
      %v465 = vmul.f32 %v462, %v464
      %v466 = vadd.f32 %v462, %v465
      %vm467 = vweird.f32 %v462
      %v468 = vsel %vm467, %v462, %v466
      %v469 = vmul.f32 %v461, %v468
      %v470 = vadd.f32 %v469, 1e-05
      %v471 = vrsqrt.pop %v470
      %v472 = vmul.f32 %v471, %v470
      %v473 = vmul.f32 %v472, %v471
      %v474 = vmul.f32 0.5, %v473
      %v475 = vsub.f32 1.5, %v474
      %v476 = vmul.f32 %v471, %v475
      %vm477 = vweird.f32 %v470
      %vm478 = vweird.f32 %v471
      %vm479 = vmor %vm477, %vm478
      %v480 = vsel %vm479, %v471, %v476
      %v481 = vmul.f32 %v456, %v480
      %v482 = vld [vmem:[%s440] sm:$0x1]
      %v484 = vperm.slane %v482, 0
      %v486 = vmul.f32 %v481, %v484
      %v487 = vpack.c.bf16 %v486, %v486
      %v488 = vld [vmem:[%s422] sm:$0xf]
      %v489 = vld [vmem:[%s422 + $0x4] sm:$0xf]
      %v490 = vld [vmem:[%s422 + $0x8] sm:$0xf]
      %v491 = vld [vmem:[%s422 + $0xc] sm:$0xf]
      %v496 = vunpack.c.l.b16 %v488
      %v497 = vunpack.c.l.b16 %v489
      %v498 = vunpack.c.l.b16 %v490
      %v499 = vunpack.c.l.b16 %v491
      %v500 = vpack.c.b16 %v497, %v496
      %v501 = vpack.c.b16 %v499, %v498
      %v505 = vsel %vm458, %v487, 0
      %507 = vmatpush.bf16.msra.mxu0 0
      %508 = vmatpush.bf16.msra.mxu0 0
      %509 = vmatpush.bf16.msra.mxu0 0
      %510 = vmatpush.bf16.msra.mxu0 0
      %511 = vmatpush.bf16.msra.mxu0 0
      %512 = vmatpush.bf16.msra.mxu0 0
      %513 = vmatpush.bf16.msra.mxu0 %v501
      %514 = vmatpush.bf16.msra.mxu0 %v500
      %515 = vmatmul.bf16.gmra.mxu0 %v505
      %v516 = vpop.f32.mrf.mxu0
      %v517 = vadd.f32 0.0, %v516
      %v518 = vpop.f32.mrf.mxu0
      %519 = vdwg.mxu0
      %v520 = vld [vmem:[%s7] sm:$0xff]
      %v521 = vld [vmem:[%s8] sm:$0xff]
      %v522 = vmul.f32 %v517, %v520
      %524 = vrot.lane.b32.xlu0 %v521, 24
      %v525 = vpop.permute.xlu0 %524
      %v527 = vmul.f32 %v517, %v525
      %529 = vrot.lane.b32.xlu0 %v527, 104
      %v530 = vpop.permute.xlu0 %529
      %v532 = vsub.f32 %v522, %v530
      %534 = vrot.lane.b32.xlu0 %v520, 24
      %v535 = vpop.permute.xlu0 %534
      %v537 = vmul.f32 %v517, %v535
      %v538 = vmul.f32 %v517, %v521
      %540 = vrot.lane.b32.xlu0 %v538, 24
      %v541 = vpop.permute.xlu0 %540
      %v543 = vadd.f32 %v537, %v541
      %v544 = vlaneseq
      %v545 = vshrl.u32 %v544, 7
      %v546 = vlaneseq
      %v547 = vand.u32 %v546, 127
      %vm548 = vcmp.le.s32.totalorder %v547, %v545
      %v549 = vsel %vm548, 0.0, -1e+30
      %551 = vrot.lane.b32.xlu0 %v543, 108
      %v552 = vpop.permute.xlu0 %551
      %vm554 = vcmask 31744
      %v555 = vsel %vm554, %v532, %v552
      %557 = vrot.lane.b32.xlu0 %v532, 112
      %v558 = vpop.permute.xlu0 %557
      %560 = vrot.lane.b32.xlu0 %v543, 92
      %v561 = vpop.permute.xlu0 %560
      %v563 = vsel %vm554, %v558, %v561
      %vm564 = vcmask 64512
      %v566 = vsel %vm564, %v555, 0
      %v569 = vsel %vm564, %v563, 0
      %571 = vmatpush.xpose.msra.mxu0 0.0
      %572 = vmatpush.xpose.msra.mxu0 0.0
      %573 = vmatpush.xpose.msra.mxu0 0.0
      %574 = vmatpush.xpose.msra.mxu0 0.0
      %575 = vmatpush.xpose.msra.mxu0 0.0
      %576 = vmatpush.xpose.msra.mxu0 0.0
      %577 = vmatpush.xpose.msra.mxu0 0.0
      %578 = vmatpush.xpose.msra.mxu0 0.0
      %579 = vmatpush.xpose.msra.mxu0 0.0
      %580 = vmatpush.xpose.msra.mxu0 0.0
      %581 = vmatpush.xpose.msra.mxu0 0.0
      %582 = vmatpush.xpose.msra.mxu0 0.0
      %583 = vmatpush.xpose.msra.mxu0 0.0
      %584 = vmatpush.xpose.msra.mxu0 0.0
      %585 = vmatpush.xpose.msra.mxu0 0.0
      %586 = vmatpush.xpose.msra.mxu0 %v569
      %587 = vmatmul.f32.gmra.mxu0 %v566
      %v588 = vpop.f32.mrf.mxu0
      %v589 = vadd.f32 %v549, %v588
      %590 = vdwg.mxu0
      %v591 = vsel %vm564, %v589, -inf
      %592 = vmax.xlane.f32.xlu0 %v591
      %v593 = vpop.xlane.xlu0 %592
      %v594 = vsub.f32 %v589, %v593
      %v595 = vmul.f32 %v594, 1.442695
      %v596 = vpow.pop %v595
      %v597 = vsel %vm564, %v596, 0.0
      %598 = vadd.xlane.f32.xlu0 %v597
      %v599 = vpop.xlane.xlu0 %598
      %v600 = vrcp.pop %v599
      %v601 = vmul.f32 %v596, %v600
      %603 = vrot.lane.b32.xlu0 %v517, 80
      %v604 = vpop.permute.xlu0 %603
      %v607 = vsel %vm564, %v601, 0
      %609 = vmatpush.msra.mxu0 0.0
      %610 = vmatpush.msra.mxu0 0.0
      %611 = vmatpush.msra.mxu0 0.0
      %612 = vmatpush.msra.mxu0 0.0
      %613 = vmatpush.msra.mxu0 0.0
      %614 = vmatpush.msra.mxu0 0.0
      %615 = vmatpush.msra.mxu0 0.0
      %616 = vmatpush.msra.mxu0 0.0
      %617 = vmatpush.msra.mxu0 0.0
      %618 = vmatpush.msra.mxu0 0.0
      %619 = vmatpush.msra.mxu0 0.0
      %620 = vmatpush.msra.mxu0 0.0
      %621 = vmatpush.msra.mxu0 0.0
      %622 = vmatpush.msra.mxu0 0.0
      %623 = vmatpush.msra.mxu0 0.0
      %624 = vmatpush.msra.mxu0 %v604
      %625 = vmatmul.f32.gmra.mxu0 %v607
      %v626 = vpop.f32.mrf.mxu0
      %v627 = vadd.f32 0.0, %v626
      %628 = vdwg.mxu0
      %629 = vrot.lane.b32.xlu0 %v532, 124
      %v630 = vpop.permute.xlu0 %629
      %632 = vrot.lane.b32.xlu0 %v543, 104
      %v633 = vpop.permute.xlu0 %632
      %v635 = vsel %vm554, %v630, %v633
      %v637 = vsel %vm564, %v635, 0
      %639 = vmatpush.xpose.msra.mxu0 0.0
      %640 = vmatpush.xpose.msra.mxu0 0.0
      %641 = vmatpush.xpose.msra.mxu0 0.0
      %642 = vmatpush.xpose.msra.mxu0 0.0
      %643 = vmatpush.xpose.msra.mxu0 0.0
      %644 = vmatpush.xpose.msra.mxu0 0.0
      %645 = vmatpush.xpose.msra.mxu0 0.0
      %646 = vmatpush.xpose.msra.mxu0 0.0
      %647 = vmatpush.xpose.msra.mxu0 0.0
      %648 = vmatpush.xpose.msra.mxu0 0.0
      %649 = vmatpush.xpose.msra.mxu0 0.0
      %650 = vmatpush.xpose.msra.mxu0 0.0
      %651 = vmatpush.xpose.msra.mxu0 0.0
      %652 = vmatpush.xpose.msra.mxu0 0.0
      %653 = vmatpush.xpose.msra.mxu0 0.0
      %654 = vmatpush.xpose.msra.mxu0 %v569
      %655 = vmatmul.f32.gmra.mxu0 %v637
      %v656 = vpop.f32.mrf.mxu0
      %v657 = vadd.f32 %v549, %v656
      %658 = vdwg.mxu0
      %v659 = vsel %vm564, %v657, -inf
      %660 = vmax.xlane.f32.xlu0 %v659
      %v661 = vpop.xlane.xlu0 %660
      %v662 = vsub.f32 %v657, %v661
      %v663 = vmul.f32 %v662, 1.442695
      %v664 = vpow.pop %v663
      %v665 = vsel %vm564, %v664, 0.0
      %666 = vadd.xlane.f32.xlu0 %v665
      %v667 = vpop.xlane.xlu0 %666
      %v668 = vrcp.pop %v667
      %v669 = vmul.f32 %v664, %v668
      %v671 = vsel %vm564, %v669, 0
      %673 = vmatpush.msra.mxu0 0.0
      %674 = vmatpush.msra.mxu0 0.0
      %675 = vmatpush.msra.mxu0 0.0
      %676 = vmatpush.msra.mxu0 0.0
      %677 = vmatpush.msra.mxu0 0.0
      %678 = vmatpush.msra.mxu0 0.0
      %679 = vmatpush.msra.mxu0 0.0
      %680 = vmatpush.msra.mxu0 0.0
      %681 = vmatpush.msra.mxu0 0.0
      %682 = vmatpush.msra.mxu0 0.0
      %683 = vmatpush.msra.mxu0 0.0
      %684 = vmatpush.msra.mxu0 0.0
      %685 = vmatpush.msra.mxu0 0.0
      %686 = vmatpush.msra.mxu0 0.0
      %687 = vmatpush.msra.mxu0 0.0
      %688 = vmatpush.msra.mxu0 %v604
      %689 = vmatmul.f32.gmra.mxu0 %v671
      %v690 = vpop.f32.mrf.mxu0
      %v691 = vadd.f32 0.0, %v690
      %692 = vdwg.mxu0
      %693 = vrot.lane.b32.xlu0 %v532, 120
      %v694 = vpop.permute.xlu0 %693
      %696 = vrot.lane.b32.xlu0 %v543, 100
      %v697 = vpop.permute.xlu0 %696
      %v699 = vsel %vm554, %v694, %v697
      %700 = vrot.lane.b32.xlu0 %v532, 108
      %v701 = vpop.permute.xlu0 %700
      %703 = vrot.lane.b32.xlu0 %v543, 88
      %v704 = vpop.permute.xlu0 %703
      %v706 = vsel %vm554, %v701, %v704
      %v708 = vsel %vm564, %v699, 0
      %v711 = vsel %vm564, %v706, 0
      %713 = vmatpush.xpose.msra.mxu0 0.0
      %714 = vmatpush.xpose.msra.mxu0 0.0
      %715 = vmatpush.xpose.msra.mxu0 0.0
      %716 = vmatpush.xpose.msra.mxu0 0.0
      %717 = vmatpush.xpose.msra.mxu0 0.0
      %718 = vmatpush.xpose.msra.mxu0 0.0
      %719 = vmatpush.xpose.msra.mxu0 0.0
      %720 = vmatpush.xpose.msra.mxu0 0.0
      %721 = vmatpush.xpose.msra.mxu0 0.0
      %722 = vmatpush.xpose.msra.mxu0 0.0
      %723 = vmatpush.xpose.msra.mxu0 0.0
      %724 = vmatpush.xpose.msra.mxu0 0.0
      %725 = vmatpush.xpose.msra.mxu0 0.0
      %726 = vmatpush.xpose.msra.mxu0 0.0
      %727 = vmatpush.xpose.msra.mxu0 0.0
      %728 = vmatpush.xpose.msra.mxu0 %v711
      %729 = vmatmul.f32.gmra.mxu0 %v708
      %v730 = vpop.f32.mrf.mxu0
      %v731 = vadd.f32 %v549, %v730
      %732 = vdwg.mxu0
      %v733 = vsel %vm564, %v731, -inf
      %734 = vmax.xlane.f32.xlu0 %v733
      %v735 = vpop.xlane.xlu0 %734
      %v736 = vsub.f32 %v731, %v735
      %v737 = vmul.f32 %v736, 1.442695
      %v738 = vpow.pop %v737
      %v739 = vsel %vm564, %v738, 0.0
      %740 = vadd.xlane.f32.xlu0 %v739
      %v741 = vpop.xlane.xlu0 %740
      %v742 = vrcp.pop %v741
      %v743 = vmul.f32 %v738, %v742
      %744 = vrot.lane.b32.xlu0 %v517, 72
      %v745 = vpop.permute.xlu0 %744
      %v748 = vsel %vm564, %v743, 0
      %750 = vmatpush.msra.mxu0 0.0
      %751 = vmatpush.msra.mxu0 0.0
      %752 = vmatpush.msra.mxu0 0.0
      %753 = vmatpush.msra.mxu0 0.0
      %754 = vmatpush.msra.mxu0 0.0
      %755 = vmatpush.msra.mxu0 0.0
      %756 = vmatpush.msra.mxu0 0.0
      %757 = vmatpush.msra.mxu0 0.0
      %758 = vmatpush.msra.mxu0 0.0
      %759 = vmatpush.msra.mxu0 0.0
      %760 = vmatpush.msra.mxu0 0.0
      %761 = vmatpush.msra.mxu0 0.0
      %762 = vmatpush.msra.mxu0 0.0
      %763 = vmatpush.msra.mxu0 0.0
      %764 = vmatpush.msra.mxu0 0.0
      %765 = vmatpush.msra.mxu0 %v745
      %766 = vmatmul.f32.gmra.mxu0 %v748
      %v767 = vpop.f32.mrf.mxu0
      %v768 = vadd.f32 0.0, %v767
      %769 = vdwg.mxu0
      %770 = vrot.lane.b32.xlu0 %v532, 116
      %v771 = vpop.permute.xlu0 %770
      %773 = vrot.lane.b32.xlu0 %v543, 96
      %v774 = vpop.permute.xlu0 %773
      %v776 = vsel %vm554, %v771, %v774
      %v778 = vsel %vm564, %v776, 0
      %780 = vmatpush.xpose.msra.mxu0 0.0
      %781 = vmatpush.xpose.msra.mxu0 0.0
      %782 = vmatpush.xpose.msra.mxu0 0.0
      %783 = vmatpush.xpose.msra.mxu0 0.0
      %784 = vmatpush.xpose.msra.mxu0 0.0
      %785 = vmatpush.xpose.msra.mxu0 0.0
      %786 = vmatpush.xpose.msra.mxu0 0.0
      %787 = vmatpush.xpose.msra.mxu0 0.0
      %788 = vmatpush.xpose.msra.mxu0 0.0
      %789 = vmatpush.xpose.msra.mxu0 0.0
      %790 = vmatpush.xpose.msra.mxu0 0.0
      %791 = vmatpush.xpose.msra.mxu0 0.0
      %792 = vmatpush.xpose.msra.mxu0 0.0
      %793 = vmatpush.xpose.msra.mxu0 0.0
      %794 = vmatpush.xpose.msra.mxu0 0.0
      %795 = vmatpush.xpose.msra.mxu0 %v711
      %796 = vmatmul.f32.gmra.mxu0 %v778
      %v797 = vpop.f32.mrf.mxu0
      %v798 = vadd.f32 %v549, %v797
      %799 = vdwg.mxu0
      %v800 = vsel %vm564, %v798, -inf
      %801 = vmax.xlane.f32.xlu0 %v800
      %v802 = vpop.xlane.xlu0 %801
      %v803 = vsub.f32 %v798, %v802
      %v804 = vmul.f32 %v803, 1.442695
      %v805 = vpow.pop %v804
      %v806 = vsel %vm564, %v805, 0.0
      %807 = vadd.xlane.f32.xlu0 %v806
      %v808 = vpop.xlane.xlu0 %807
      %v809 = vrcp.pop %v808
      %v810 = vmul.f32 %v805, %v809
      %v812 = vsel %vm564, %v810, 0
      %814 = vmatpush.msra.mxu0 0.0
      %815 = vmatpush.msra.mxu0 0.0
      %816 = vmatpush.msra.mxu0 0.0
      %817 = vmatpush.msra.mxu0 0.0
      %818 = vmatpush.msra.mxu0 0.0
      %819 = vmatpush.msra.mxu0 0.0
      %820 = vmatpush.msra.mxu0 0.0
      %821 = vmatpush.msra.mxu0 0.0
      %822 = vmatpush.msra.mxu0 0.0
      %823 = vmatpush.msra.mxu0 0.0
      %824 = vmatpush.msra.mxu0 0.0
      %825 = vmatpush.msra.mxu0 0.0
      %826 = vmatpush.msra.mxu0 0.0
      %827 = vmatpush.msra.mxu0 0.0
      %828 = vmatpush.msra.mxu0 0.0
      %829 = vmatpush.msra.mxu0 %v745
      %830 = vmatmul.f32.gmra.mxu0 %v812
      %v831 = vpop.f32.mrf.mxu0
      %v832 = vadd.f32 0.0, %v831
      %833 = vdwg.mxu0
      %835 = vrot.lane.b32.xlu0 %v691, 8
      %v836 = vpop.permute.xlu0 %835
      %839 = vrot.lane.b32.xlu0 %v768, 16
      %v840 = vpop.permute.xlu0 %839
      %843 = vrot.lane.b32.xlu0 %v832, 24
      %v844 = vpop.permute.xlu0 %843
      %v846 = vsel %vm564, %v627, %v836
      %vm847 = vcmask 130048
      %v848 = vsel %vm847, %v846, %v840
      %vm849 = vcmask 195584
      %v850 = vsel %vm849, %v848, %v844
      %v851 = vpack.c.bf16 %v850, %v850
      %v852 = vld [vmem:[%s427] sm:$0xf]
      %v853 = vld [vmem:[%s427 + $0x4] sm:$0xf]
      %v854 = vld [vmem:[%s427 + $0x8] sm:$0xf]
      %v855 = vld [vmem:[%s427 + $0xc] sm:$0xf]
      %v860 = vunpack.c.l.b16 %v852
      %v861 = vunpack.c.l.b16 %v853
      %v862 = vunpack.c.l.b16 %v854
      %v863 = vunpack.c.l.b16 %v855
      %v864 = vpack.c.b16 %v861, %v860
      %v865 = vpack.c.b16 %v863, %v862
      %v869 = vsel %vm458, %v851, 0
      %871 = vmatpush.bf16.msra.mxu0 0
      %872 = vmatpush.bf16.msra.mxu0 0
      %873 = vmatpush.bf16.msra.mxu0 0
      %874 = vmatpush.bf16.msra.mxu0 0
      %875 = vmatpush.bf16.msra.mxu0 0
      %876 = vmatpush.bf16.msra.mxu0 0
      %877 = vmatpush.bf16.msra.mxu0 %v865
      %878 = vmatpush.bf16.msra.mxu0 %v864
      %879 = vmatmul.bf16.gmra.mxu0 %v869
      %v880 = vpop.f32.mrf.mxu0
      %v881 = vadd.f32 0.0, %v880
      %v882 = vpop.f32.mrf.mxu0
      %883 = vdwg.mxu0
      %v884 = vadd.f32 %v456, %v881
      %v885 = vmul.f32 %v884, %v884
      %v886 = vsel %vm458, %v885, 0.0
      %887 = vadd.xlane.f32.xlu0 %v886
      %v888 = vpop.xlane.xlu0 %887
      %v889 = vmul.f32 %v888, %v468
      %v890 = vadd.f32 %v889, 1e-05
      %v891 = vrsqrt.pop %v890
      %v892 = vmul.f32 %v891, %v890
      %v893 = vmul.f32 %v892, %v891
      %v894 = vmul.f32 0.5, %v893
      %v895 = vsub.f32 1.5, %v894
      %v896 = vmul.f32 %v891, %v895
      %vm897 = vweird.f32 %v890
      %vm898 = vweird.f32 %v891
      %vm899 = vmor %vm897, %vm898
      %v900 = vsel %vm899, %v891, %v896
      %v901 = vmul.f32 %v884, %v900
      %v902 = vld [vmem:[%s443] sm:$0x1]
      %v904 = vperm.slane %v902, 0
      %v906 = vmul.f32 %v901, %v904
      %v907 = vpack.c.bf16 %v906, %v906
      %v908 = vld [vmem:[%s432] sm:$0xf]
      %v909 = vld [vmem:[%s432 + $0x4] sm:$0xf]
      %v910 = vld [vmem:[%s432 + $0x8] sm:$0xf]
      %v911 = vld [vmem:[%s432 + $0xc] sm:$0xf]
      %v916 = vunpack.c.l.b16 %v908
      %v917 = vunpack.c.l.b16 %v909
      %v918 = vunpack.c.l.b16 %v910
      %v919 = vunpack.c.l.b16 %v911
      %v920 = vpack.c.b16 %v917, %v916
      %v921 = vpack.c.b16 %v919, %v918
      %v925 = vsel %vm458, %v907, 0
      %927 = vmatpush.bf16.msra.mxu0 0
      %928 = vmatpush.bf16.msra.mxu0 0
      %929 = vmatpush.bf16.msra.mxu0 0
      %930 = vmatpush.bf16.msra.mxu0 0
      %931 = vmatpush.bf16.msra.mxu0 0
      %932 = vmatpush.bf16.msra.mxu0 0
      %933 = vmatpush.bf16.msra.mxu0 %v921
      %934 = vmatpush.bf16.msra.mxu0 %v920
      %935 = vmatmul.bf16.gmra.mxu0 %v925
      %v936 = vpop.f32.mrf.mxu0
      %v937 = vadd.f32 0.0, %v936
      %v938 = vpop.f32.mrf.mxu0
      %939 = vdwg.mxu0
      %v940 = vxor.u32 %v937, 2147483648
      %v941 = vmul.f32 %v940, 1.442695
      %v942 = vpow.pop %v941
      %v943 = vadd.f32 %v942, 1.0
      %v944 = vrcp.pop %v943
      %v945 = vmul.f32 %v943, %v944
      %v946 = vsub.f32 1.0, %v945
      %v947 = vmul.f32 %v944, %v946
      %v948 = vadd.f32 %v944, %v947
      %vm949 = vweird.f32 %v943
      %vm950 = vweird.f32 %v944
      %vm951 = vmor %vm949, %vm950
      %v952 = vsel %vm951, %v944, %v948
      %v953 = vand.u32 2147483647, %v943
      %vm954 = vcmp.eq.f32.partialorder %v953, 8.507059e+37
      %v955 = vand.u32 %v943, 2147483648
      %v956 = vor.u32 1.1754944e-38, %v955
      %v957 = vsel %vm954, %v956, %v952
      %v958 = vmul.f32 1.0, %v957
      %v959 = vmul.f32 %v937, %v958
      %961 = vrot.lane.b32.xlu0 %v937, 64
      %v962 = vpop.permute.xlu0 %961
      %v964 = vmul.f32 %v959, %v962
      %v965 = vpack.c.bf16 %v964, %v964
      %v966 = vld [vmem:[%s437] sm:$0xf]
      %v967 = vld [vmem:[%s437 + $0x4] sm:$0xf]
      %v968 = vld [vmem:[%s437 + $0x8] sm:$0xf]
      %v969 = vld [vmem:[%s437 + $0xc] sm:$0xf]
      %v970 = vld [vmem:[%s437 + $0x10] sm:$0xf]
      %v971 = vld [vmem:[%s437 + $0x14] sm:$0xf]
      %v972 = vld [vmem:[%s437 + $0x18] sm:$0xf]
      %v973 = vld [vmem:[%s437 + $0x1c] sm:$0xf]
      %v982 = vunpack.c.l.b16 %v966
      %v983 = vunpack.c.l.b16 %v967
      %v984 = vunpack.c.l.b16 %v968
      %v985 = vunpack.c.l.b16 %v969
      %v986 = vunpack.c.l.b16 %v970
      %v987 = vunpack.c.l.b16 %v971
      %v988 = vunpack.c.l.b16 %v972
      %v989 = vunpack.c.l.b16 %v973
      %v990 = vpack.c.b16 %v983, %v982
      %v991 = vpack.c.b16 %v985, %v984
      %v992 = vpack.c.b16 %v987, %v986
      %v993 = vpack.c.b16 %v989, %v988
      %vm998 = vcmask 523264
      %v1000 = vsel %vm998, %v965, 0
      %1002 = vmatpush.bf16.msra.mxu0 0
      %1003 = vmatpush.bf16.msra.mxu0 0
      %1004 = vmatpush.bf16.msra.mxu0 0
      %1005 = vmatpush.bf16.msra.mxu0 0
      %1006 = vmatpush.bf16.msra.mxu0 %v993
      %1007 = vmatpush.bf16.msra.mxu0 %v992
      %1008 = vmatpush.bf16.msra.mxu0 %v991
      %1009 = vmatpush.bf16.msra.mxu0 %v990
      %1010 = vmatmul.bf16.gmra.mxu0 %v1000
      %v1011 = vpop.f32.mrf.mxu0
      %v1012 = vadd.f32 0.0, %v1011
      %v1013 = vpop.f32.mrf.mxu0
      %1014 = vdwg.mxu0
      %v1015 = vadd.f32 %v884, %v1012
      %1016 = vst.msk [vmem:[%s447] sm:$0xff] %vm458, %v1015
      %p1017 = scmp.lt.s32.totalorder %s24, 1
      %s1018 = scalar_select %p1017, %s24, 1
      %s1019 = smul.addr %s1018, 8
      %s1020 = scalar_lea.vmem %s9, %s1019
      // Predicated region
      $region61: #{transformer_forward.4} parent=55 // pred_check
        %p1021 = pneg %p274
      $region62: #{transformer_forward.4} parent=55 // pred_check_branch
        %1023 = sbr.rel (%p1021) target = $region64
      $region63: #{transformer_forward.4} parent=55 // pred_region
        _
      $region64: #{transformer_forward.4} parent=55 // pred_fallthru
        _
    $region56: #{transformer_forward.4} parent=5 // pred_fallthru
      _
    %p1024 = scmp.le.s32.totalorder 2, %s15
    // Predicated region
    $region65: #{transformer_forward.4} parent=5 // pred_check
      %p1025 = pneg %p1024
    $region66: #{transformer_forward.4} parent=5 // pred_check_branch
      %1027 = sbr.rel (%p1025) target = $region68
    $region67: #{transformer_forward.4} parent=5 // pred_region
      %s1028 = ssub.s32 %s15, 2
      // Predicated region
      $region69: #{transformer_forward.4} parent=67 // pred_check
        %p1029 = pneg %p280
      $region70: #{transformer_forward.4} parent=67 // pred_check_branch
        %1031 = sbr.rel (%p1029) target = $region72
      $region71: #{transformer_forward.4} parent=67 // pred_region
        %p1032 = scmp.lt.s32.totalorder %s26, 1
        %s1033 = scalar_select %p1032, %s26, 1
        %s1034 = smul.addr %s1033, 8
        %s1035 = scalar_lea.vmem %s9, %s1034
      $region72: #{transformer_forward.4} parent=67 // pred_fallthru
        _
    $region68: #{transformer_forward.4} parent=5 // pred_fallthru
      _
  $region6: #{transformer_forward.4} parent=0 // loop_footer
    %s19 = sadd.s32 1, %s15
  $region7: #{transformer_forward.4} parent=0 // loop_footer_branch
    %14 = sbr.rel target = $region3
  $region8: #{transformer_forward.4} parent=0 // loop_exit
    _

</llo_original>
